<compile_context>
chip_gen: v6e
topology: v6e:2x2x1
jax: 0.10.0
libtpu: 0.0.40
codegen_flags: <defaults>
</compile_context>

<pallas_src>
import jax
import jax.numpy as jnp
import numpy as np
from jax import lax
from jax.experimental import pallas as pl
from jax.experimental.pallas import tpu as pltpu

SUBLANE = 8
LANE = 128


def _round_up(x, m):
    return (x + m - 1) // m * m


def _fold_bn(gamma, beta, running_mean, running_var, eps=1e-5):
    scale = gamma / jnp.sqrt(running_var + eps)
    bias = beta - running_mean * scale
    return scale, bias


# -----------------------------------------------------------------------------
# Fused kernel: conv0+BN+ReLU -> conv1+BN+ReLU -> conv2+BN + residual + ReLU.
# One grid step = one batch element; h and r never leave VMEM.
# Layout: channels on sublanes, flattened spatial (H*W, padded to 128) on lanes.
# -----------------------------------------------------------------------------
def _make_fused_kernel(H, W, HW, HW_p, KH, KW):
    taps = [(kh - KH // 2) * W + (kw - KW // 2)
            for kh in range(KH) for kw in range(KW)]
    n_taps = len(taps)

    def kernel(x_ref, w0_ref, w1_ref, w2_ref, bias_ref, mask_ref, out_ref):
        # Per-tap boundary masks (1, HW_p), loaded once per grid step.
        masks = [mask_ref[t] for t in range(n_taps)]

        def conv_bn_act(src, w_stage_ref, bias_row, residual=None):
            # src: (C, HW_p).  Build the 9 tap-shifted operands with an aligned
            # circular extension along lanes + statically-offset windows; any
            # wrapped / out-of-image position is zeroed by the mask (this is
            # the conv zero padding).  All taps are packed into the
            # contraction dim -> ONE MXU matmul per stage.
            ext = jnp.concatenate([src, src], axis=1)          # (C, 2*HW_p)
            pieces = []
            for t, off in enumerate(taps):
                s = off % HW_p
                win = src if s == 0 else ext[:, s:s + HW_p]    # win[p]=src[p+off]
                pieces.append(win * masks[t])
            patch = jnp.concatenate(pieces, axis=0)            # (9*C, HW_p)
            y = jnp.dot(w_stage_ref[...], patch,               # BN scale in w
                        preferred_element_type=jnp.float32)
            y = y + bias_row                                   # folded BN bias
            if residual is not None:                           # skip connection
                y = y + residual
            return jnp.maximum(y, 0.0)                         # ReLU

        x = x_ref[0]                                           # (Cin_s, HW_p)
        h = conv_bn_act(x, w0_ref, bias_ref[0])                # ConvBR
        r = conv_bn_act(h, w1_ref, bias_ref[1])                # ResBlock conv1
        out = conv_bn_act(r, w2_ref, bias_ref[2], residual=h)  # conv2 + skip
        out_ref[0] = out.astype(out_ref.dtype)

    return kernel


# -----------------------------------------------------------------------------
# Wrapper: NCHW in, NCHW out.  The H*W flatten is a pure metadata reshape.
# -----------------------------------------------------------------------------
def encode_block_forward(x_nchw, params):
    """x_nchw: (N, C_in, H, W) — PyTorch layout. Returns (N, C_out, H, W)."""
    x = x_nchw.astype(jnp.float32)
    N, Cin, H, W = x.shape
    KH, KW, _, Cout = params["conv0_w"].shape
    HW = H * W
    HW_p = _round_up(HW, LANE)
    Cin_s = _round_up(Cin, SUBLANE)    # sublane multiple only — NOT 128
    Cout_s = _round_up(Cout, SUBLANE)

    # Fold BN (inference) into per-channel scale/bias; fold scale into weights.
    s0, b0 = _fold_bn(*params["bn0"])
    s1, b1 = _fold_bn(*params["bn1"])
    s2, b2 = _fold_bn(*params["bn2"])

    def pack_w(w_hwio, scale, cin, cin_s):
        w = w_hwio.astype(jnp.float32) * scale[None, None, None, :]
        w = jnp.pad(w, ((0, 0), (0, 0), (0, cin_s - cin), (0, Cout_s - Cout)))
        # (KH, KW, cin_s, Cout_s) -> (Cout_s, KH*KW*cin_s), tap-major K order.
        return jnp.transpose(w, (3, 0, 1, 2)).reshape(Cout_s, KH * KW * cin_s)

    w0 = pack_w(params["conv0_w"], s0, Cin, Cin_s)
    w1 = pack_w(params["conv1_w"], s1, Cout, Cout_s)
    w2 = pack_w(params["conv2_w"], s2, Cout, Cout_s)

    def pad_bias(b):
        return jnp.pad(b.astype(jnp.float32), (0, Cout_s - Cout))

    bias = jnp.stack([pad_bias(b0), pad_bias(b1), pad_bias(b2)])[:, :, None]

    # Per-tap boundary masks over the flattened spatial axis (conv zero pad).
    pos = np.arange(HW_p)
    row, col = pos // W, pos % W
    mask_list = []
    for kh in range(KH):
        for kw in range(KW):
            dh, dw = kh - KH // 2, kw - KW // 2
            m = ((pos < HW) & (row + dh >= 0) & (row + dh < H)
                 & (col + dw >= 0) & (col + dw < W))
            mask_list.append(m)
    mask_arr = jnp.asarray(np.stack(mask_list)[:, None, :].astype(np.float32))

    # NCHW -> (N, Cin_s, HW_p): channels padded only to the 8-sublane multiple.
    x_flat = jnp.pad(x.reshape(N, Cin, HW),
                     ((0, 0), (0, Cin_s - Cin), (0, HW_p - HW)))

    kernel = _make_fused_kernel(H, W, HW, HW_p, KH, KW)

    # VMEM budget: in/out blocks (double buffered) + weights/masks + temporaries.
    blk = (Cin_s + Cout_s) * HW_p
    wgt = Cout_s * KH * KW * (Cin_s + 2 * Cout_s)
    cst = (KH * KW + 3) * HW_p
    tmp = (2 * KH * KW * Cout_s + 4 * Cout_s) * HW_p
    est_bytes = 4 * (2 * blk + 2 * wgt + 2 * cst + tmp)
    vmem_limit = int(min(max(2 * est_bytes, 8 * 2 ** 20), 48 * 2 ** 20))

    out_flat = pl.pallas_call(
        kernel,
        out_shape=jax.ShapeDtypeStruct((N, Cout_s, HW_p), jnp.float32),
        grid=(N,),
        in_specs=[
            pl.BlockSpec((1, Cin_s, HW_p), lambda n: (n, 0, 0)),
            pl.BlockSpec((Cout_s, KH * KW * Cin_s), lambda n: (0, 0)),
            pl.BlockSpec((Cout_s, KH * KW * Cout_s), lambda n: (0, 0)),
            pl.BlockSpec((Cout_s, KH * KW * Cout_s), lambda n: (0, 0)),
            pl.BlockSpec((3, Cout_s, 1), lambda n: (0, 0, 0)),
            pl.BlockSpec((KH * KW, 1, HW_p), lambda n: (0, 0, 0)),
        ],
        out_specs=pl.BlockSpec((1, Cout_s, HW_p), lambda n: (n, 0, 0)),
        compiler_params=pltpu.CompilerParams(
            dimension_semantics=("parallel",),
            vmem_limit_bytes=vmem_limit,
        ),
    )(x_flat, w0, w1, w2, bias, mask_arr)

    out = out_flat[:, :Cout, :HW].reshape(N, Cout, H, W)
    return out


# -----------------------------------------------------------------------------
# Parameter construction (deterministic, synthetic).
# -----------------------------------------------------------------------------
def init_encode_block_params(key, c_in, c_out, k=3):
    def conv_w(kk, cin, cout):
        fan_in = cin * k * k
        std = np.sqrt(2.0 / fan_in)   # kaiming-normal style init
        return jax.random.normal(kk, (k, k, cin, cout), dtype=jnp.float32) * std

    def bn_params(kk, c):
        kg, kb, km, kv = jax.random.split(kk, 4)
        gamma = 1.0 + 0.1 * jax.random.normal(kg, (c,), jnp.float32)
        beta = 0.1 * jax.random.normal(kb, (c,), jnp.float32)
        mean = 0.1 * jax.random.normal(km, (c,), jnp.float32)
        var = jnp.abs(1.0 + 0.1 * jax.random.normal(kv, (c,), jnp.float32))
        return (gamma, beta, mean, var)

    k1, k2, k3, k4, k5, k6 = jax.random.split(key, 6)
    return {
        "conv0_w": conv_w(k1, c_in, c_out), "bn0": bn_params(k4, c_out),
        "conv1_w": conv_w(k2, c_out, c_out), "bn1": bn_params(k5, c_out),
        "conv2_w": conv_w(k3, c_out, c_out), "bn2": bn_params(k6, c_out),
    }


# -----------------------------------------------------------------------------
# Pure-JAX reference (lax.conv) for the correctness check.
# -----------------------------------------------------------------------------
def _ref_conv(x_nhwc, w_hwio, scale, bias, residual=None, apply_relu=True):
    y = lax.conv_general_dilated(
        x_nhwc, w_hwio, window_strides=(1, 1), padding=((1, 1), (1, 1)),
        dimension_numbers=("NHWC", "HWIO", "NHWC"))
    y = y * scale[None, None, None, :] + bias[None, None, None, :]
    if residual is not None:
        y = y + residual
    if apply_relu:
        y = jnp.maximum(y, 0.0)
    return y


def encode_block_reference(x_nchw, params):
    x = jnp.transpose(x_nchw, (0, 2, 3, 1)).astype(jnp.float32)
    s0, b0 = _fold_bn(*params["bn0"])
    s1, b1 = _fold_bn(*params["bn1"])
    s2, b2 = _fold_bn(*params["bn2"])
    h = _ref_conv(x, params["conv0_w"], s0, b0)
    r = _ref_conv(h, params["conv1_w"], s1, b1)
    out = _ref_conv(r, params["conv2_w"], s2, b2, residual=h)
    return jnp.transpose(out, (0, 3, 1, 2))


if __name__ == "__main__":
    key = jax.random.PRNGKey(0)
    kx, kp = jax.random.split(key)

    N, C_IN, C_OUT, H, W = 2, 4, 8, 16, 16
    x = jax.random.normal(kx, (N, C_IN, H, W), dtype=jnp.float32)   # NCHW input
    params = init_encode_block_params(kp, C_IN, C_OUT)

    out = jax.block_until_ready(encode_block_forward(x, params))
    ref = jax.block_until_ready(encode_block_reference(x, params))

    np.testing.assert_allclose(np.asarray(out), np.asarray(ref),
                               rtol=1e-4, atol=1e-4)
    assert out.shape == (N, C_OUT, H, W)
    print("KERNEL_OK")
</pallas_src>

<mosaic_0001>
module attributes {stable_mosaic.version = 11 : i64} {
  func.func @kernel(%arg0: i32, %arg1: memref<1x8x256xf32, #tpu.memory_space<vmem>>, %arg2: memref<8x72xf32, #tpu.memory_space<vmem>>, %arg3: memref<8x72xf32, #tpu.memory_space<vmem>>, %arg4: memref<8x72xf32, #tpu.memory_space<vmem>>, %arg5: memref<3x8x1xf32, #tpu.memory_space<vmem>>, %arg6: memref<9x1x256xf32, #tpu.memory_space<vmem>>, %arg7: memref<1x8x256xf32, #tpu.memory_space<vmem>>) attributes {dimension_semantics = [#tpu.dimension_semantics<parallel>], iteration_bounds = array<i64: 2>, scalar_prefetch = 0 : i64, scratch_operands = 0 : i64, tpu.core_type = #tpu.core_type<tc>, window_params = [{transform_indices = @transform_0, window_bounds = array<i64: 1, 8, 256>}, {pipeline_mode = #tpu.pipeline_mode<synchronous>, transform_indices = @transform_1, window_bounds = array<i64: 8, 72>}, {pipeline_mode = #tpu.pipeline_mode<synchronous>, transform_indices = @transform_2, window_bounds = array<i64: 8, 72>}, {pipeline_mode = #tpu.pipeline_mode<synchronous>, transform_indices = @transform_3, window_bounds = array<i64: 8, 72>}, {pipeline_mode = #tpu.pipeline_mode<synchronous>, transform_indices = @transform_4, window_bounds = array<i64: 3, 8, 1>}, {pipeline_mode = #tpu.pipeline_mode<synchronous>, transform_indices = @transform_5, window_bounds = array<i64: 9, 1, 256>}, {transform_indices = @transform_6, window_bounds = array<i64: 1, 8, 256>}]} {
    %c0 = arith.constant 0 : index
    %c0_0 = arith.constant 0 : index
    %c0_1 = arith.constant 0 : index
    %0 = vector.load %arg6[%c0, %c0_0, %c0_1] : memref<9x1x256xf32, #tpu.memory_space<vmem>>, vector<1x1x256xf32>
    %1 = vector.shape_cast %0 : vector<1x1x256xf32> to vector<1x256xf32>
    %c1 = arith.constant 1 : index
    %c0_2 = arith.constant 0 : index
    %c0_3 = arith.constant 0 : index
    %2 = vector.load %arg6[%c1, %c0_2, %c0_3] : memref<9x1x256xf32, #tpu.memory_space<vmem>>, vector<1x1x256xf32>
    %3 = vector.shape_cast %2 : vector<1x1x256xf32> to vector<1x256xf32>
    %c2 = arith.constant 2 : index
    %c0_4 = arith.constant 0 : index
    %c0_5 = arith.constant 0 : index
    %4 = vector.load %arg6[%c2, %c0_4, %c0_5] : memref<9x1x256xf32, #tpu.memory_space<vmem>>, vector<1x1x256xf32>
    %5 = vector.shape_cast %4 : vector<1x1x256xf32> to vector<1x256xf32>
    %c3 = arith.constant 3 : index
    %c0_6 = arith.constant 0 : index
    %c0_7 = arith.constant 0 : index
    %6 = vector.load %arg6[%c3, %c0_6, %c0_7] : memref<9x1x256xf32, #tpu.memory_space<vmem>>, vector<1x1x256xf32>
    %7 = vector.shape_cast %6 : vector<1x1x256xf32> to vector<1x256xf32>
    %c4 = arith.constant 4 : index
    %c0_8 = arith.constant 0 : index
    %c0_9 = arith.constant 0 : index
    %8 = vector.load %arg6[%c4, %c0_8, %c0_9] : memref<9x1x256xf32, #tpu.memory_space<vmem>>, vector<1x1x256xf32>
    %9 = vector.shape_cast %8 : vector<1x1x256xf32> to vector<1x256xf32>
    %c5 = arith.constant 5 : index
    %c0_10 = arith.constant 0 : index
    %c0_11 = arith.constant 0 : index
    %10 = vector.load %arg6[%c5, %c0_10, %c0_11] : memref<9x1x256xf32, #tpu.memory_space<vmem>>, vector<1x1x256xf32>
    %11 = vector.shape_cast %10 : vector<1x1x256xf32> to vector<1x256xf32>
    %c6 = arith.constant 6 : index
    %c0_12 = arith.constant 0 : index
    %c0_13 = arith.constant 0 : index
    %12 = vector.load %arg6[%c6, %c0_12, %c0_13] : memref<9x1x256xf32, #tpu.memory_space<vmem>>, vector<1x1x256xf32>
    %13 = vector.shape_cast %12 : vector<1x1x256xf32> to vector<1x256xf32>
    %c7 = arith.constant 7 : index
    %c0_14 = arith.constant 0 : index
    %c0_15 = arith.constant 0 : index
    %14 = vector.load %arg6[%c7, %c0_14, %c0_15] : memref<9x1x256xf32, #tpu.memory_space<vmem>>, vector<1x1x256xf32>
    %15 = vector.shape_cast %14 : vector<1x1x256xf32> to vector<1x256xf32>
    %c8 = arith.constant 8 : index
    %c0_16 = arith.constant 0 : index
    %c0_17 = arith.constant 0 : index
    %16 = vector.load %arg6[%c8, %c0_16, %c0_17] : memref<9x1x256xf32, #tpu.memory_space<vmem>>, vector<1x1x256xf32>
    %17 = vector.shape_cast %16 : vector<1x1x256xf32> to vector<1x256xf32>
    %c0_18 = arith.constant 0 : index
    %c0_19 = arith.constant 0 : index
    %c0_20 = arith.constant 0 : index
    %18 = vector.load %arg1[%c0_18, %c0_19, %c0_20] : memref<1x8x256xf32, #tpu.memory_space<vmem>>, vector<1x8x256xf32>
    %19 = vector.shape_cast %18 : vector<1x8x256xf32> to vector<8x256xf32>
    %c0_21 = arith.constant 0 : index
    %c0_22 = arith.constant 0 : index
    %c0_23 = arith.constant 0 : index
    %20 = vector.load %arg5[%c0_21, %c0_22, %c0_23] : memref<3x8x1xf32, #tpu.memory_space<vmem>>, vector<1x8x1xf32>
    %21 = vector.shape_cast %20 : vector<1x8x1xf32> to vector<8x1xf32>
    %22 = tpu.concatenate %19, %19 in 1 : vector<8x256xf32>, vector<8x256xf32> -> vector<8x512xf32>
    %23 = vector.extract_strided_slice %22 {offsets = [0, 239], sizes = [8, 256], strides = [1, 1]} : vector<8x512xf32> to vector<8x256xf32>
    %24 = vector.broadcast %1 : vector<1x256xf32> to vector<8x256xf32>
    %25 = arith.mulf %23, %24 : vector<8x256xf32>
    %26 = vector.extract_strided_slice %22 {offsets = [0, 240], sizes = [8, 256], strides = [1, 1]} : vector<8x512xf32> to vector<8x256xf32>
    %27 = vector.broadcast %3 : vector<1x256xf32> to vector<8x256xf32>
    %28 = arith.mulf %26, %27 : vector<8x256xf32>
    %29 = vector.extract_strided_slice %22 {offsets = [0, 241], sizes = [8, 256], strides = [1, 1]} : vector<8x512xf32> to vector<8x256xf32>
    %30 = vector.broadcast %5 : vector<1x256xf32> to vector<8x256xf32>
    %31 = arith.mulf %29, %30 : vector<8x256xf32>
    %32 = vector.extract_strided_slice %22 {offsets = [0, 255], sizes = [8, 256], strides = [1, 1]} : vector<8x512xf32> to vector<8x256xf32>
    %33 = vector.broadcast %7 : vector<1x256xf32> to vector<8x256xf32>
    %34 = arith.mulf %32, %33 : vector<8x256xf32>
    %35 = vector.broadcast %9 : vector<1x256xf32> to vector<8x256xf32>
    %36 = arith.mulf %19, %35 : vector<8x256xf32>
    %37 = vector.extract_strided_slice %22 {offsets = [0, 1], sizes = [8, 256], strides = [1, 1]} : vector<8x512xf32> to vector<8x256xf32>
    %38 = vector.broadcast %11 : vector<1x256xf32> to vector<8x256xf32>
    %39 = arith.mulf %37, %38 : vector<8x256xf32>
    %40 = vector.extract_strided_slice %22 {offsets = [0, 15], sizes = [8, 256], strides = [1, 1]} : vector<8x512xf32> to vector<8x256xf32>
    %41 = vector.broadcast %13 : vector<1x256xf32> to vector<8x256xf32>
    %42 = arith.mulf %40, %41 : vector<8x256xf32>
    %43 = vector.extract_strided_slice %22 {offsets = [0, 16], sizes = [8, 256], strides = [1, 1]} : vector<8x512xf32> to vector<8x256xf32>
    %44 = vector.broadcast %15 : vector<1x256xf32> to vector<8x256xf32>
    %45 = arith.mulf %43, %44 : vector<8x256xf32>
    %46 = vector.extract_strided_slice %22 {offsets = [0, 17], sizes = [8, 256], strides = [1, 1]} : vector<8x512xf32> to vector<8x256xf32>
    %47 = vector.broadcast %17 : vector<1x256xf32> to vector<8x256xf32>
    %48 = arith.mulf %46, %47 : vector<8x256xf32>
    %49 = tpu.concatenate %25, %28, %31, %34, %36, %39, %42, %45, %48 in 0 : vector<8x256xf32>, vector<8x256xf32>, vector<8x256xf32>, vector<8x256xf32>, vector<8x256xf32>, vector<8x256xf32>, vector<8x256xf32>, vector<8x256xf32>, vector<8x256xf32> -> vector<72x256xf32>
    %c0_24 = arith.constant 0 : index
    %c0_25 = arith.constant 0 : index
    %50 = vector.load %arg2[%c0_24, %c0_25] : memref<8x72xf32, #tpu.memory_space<vmem>>, vector<8x72xf32>
    %cst = arith.constant dense<0.000000e+00> : vector<8x256xf32>
    %51 = tpu.matmul %50, %49, %cst {dimension_numbers = #tpu.dot_dimension_numbers<[1], [0], [0], [1], [0, 0, 1, 1], [], []>} : vector<8x72xf32>, vector<72x256xf32>, vector<8x256xf32> -> vector<8x256xf32>
    %52 = vector.broadcast %21 : vector<8x1xf32> to vector<8x256xf32>
    %53 = arith.addf %51, %52 : vector<8x256xf32>
    %cst_26 = arith.constant 0.000000e+00 : f32
    %54 = vector.broadcast %cst_26 : f32 to vector<8x256xf32>
    %55 = arith.maximumf %53, %54 : vector<8x256xf32>
    %c1_27 = arith.constant 1 : index
    %c0_28 = arith.constant 0 : index
    %c0_29 = arith.constant 0 : index
    %56 = vector.load %arg5[%c1_27, %c0_28, %c0_29] : memref<3x8x1xf32, #tpu.memory_space<vmem>>, vector<1x8x1xf32>
    %57 = vector.shape_cast %56 : vector<1x8x1xf32> to vector<8x1xf32>
    %58 = tpu.concatenate %55, %55 in 1 : vector<8x256xf32>, vector<8x256xf32> -> vector<8x512xf32>
    %59 = vector.extract_strided_slice %58 {offsets = [0, 239], sizes = [8, 256], strides = [1, 1]} : vector<8x512xf32> to vector<8x256xf32>
    %60 = vector.broadcast %1 : vector<1x256xf32> to vector<8x256xf32>
    %61 = arith.mulf %59, %60 : vector<8x256xf32>
    %62 = vector.extract_strided_slice %58 {offsets = [0, 240], sizes = [8, 256], strides = [1, 1]} : vector<8x512xf32> to vector<8x256xf32>
    %63 = vector.broadcast %3 : vector<1x256xf32> to vector<8x256xf32>
    %64 = arith.mulf %62, %63 : vector<8x256xf32>
    %65 = vector.extract_strided_slice %58 {offsets = [0, 241], sizes = [8, 256], strides = [1, 1]} : vector<8x512xf32> to vector<8x256xf32>
    %66 = vector.broadcast %5 : vector<1x256xf32> to vector<8x256xf32>
    %67 = arith.mulf %65, %66 : vector<8x256xf32>
    %68 = vector.extract_strided_slice %58 {offsets = [0, 255], sizes = [8, 256], strides = [1, 1]} : vector<8x512xf32> to vector<8x256xf32>
    %69 = vector.broadcast %7 : vector<1x256xf32> to vector<8x256xf32>
    %70 = arith.mulf %68, %69 : vector<8x256xf32>
    %71 = vector.broadcast %9 : vector<1x256xf32> to vector<8x256xf32>
    %72 = arith.mulf %55, %71 : vector<8x256xf32>
    %73 = vector.extract_strided_slice %58 {offsets = [0, 1], sizes = [8, 256], strides = [1, 1]} : vector<8x512xf32> to vector<8x256xf32>
    %74 = vector.broadcast %11 : vector<1x256xf32> to vector<8x256xf32>
    %75 = arith.mulf %73, %74 : vector<8x256xf32>
    %76 = vector.extract_strided_slice %58 {offsets = [0, 15], sizes = [8, 256], strides = [1, 1]} : vector<8x512xf32> to vector<8x256xf32>
    %77 = vector.broadcast %13 : vector<1x256xf32> to vector<8x256xf32>
    %78 = arith.mulf %76, %77 : vector<8x256xf32>
    %79 = vector.extract_strided_slice %58 {offsets = [0, 16], sizes = [8, 256], strides = [1, 1]} : vector<8x512xf32> to vector<8x256xf32>
    %80 = vector.broadcast %15 : vector<1x256xf32> to vector<8x256xf32>
    %81 = arith.mulf %79, %80 : vector<8x256xf32>
    %82 = vector.extract_strided_slice %58 {offsets = [0, 17], sizes = [8, 256], strides = [1, 1]} : vector<8x512xf32> to vector<8x256xf32>
    %83 = vector.broadcast %17 : vector<1x256xf32> to vector<8x256xf32>
    %84 = arith.mulf %82, %83 : vector<8x256xf32>
    %85 = tpu.concatenate %61, %64, %67, %70, %72, %75, %78, %81, %84 in 0 : vector<8x256xf32>, vector<8x256xf32>, vector<8x256xf32>, vector<8x256xf32>, vector<8x256xf32>, vector<8x256xf32>, vector<8x256xf32>, vector<8x256xf32>, vector<8x256xf32> -> vector<72x256xf32>
    %c0_30 = arith.constant 0 : index
    %c0_31 = arith.constant 0 : index
    %86 = vector.load %arg3[%c0_30, %c0_31] : memref<8x72xf32, #tpu.memory_space<vmem>>, vector<8x72xf32>
    %cst_32 = arith.constant dense<0.000000e+00> : vector<8x256xf32>
    %87 = tpu.matmul %86, %85, %cst_32 {dimension_numbers = #tpu.dot_dimension_numbers<[1], [0], [0], [1], [0, 0, 1, 1], [], []>} : vector<8x72xf32>, vector<72x256xf32>, vector<8x256xf32> -> vector<8x256xf32>
    %88 = vector.broadcast %57 : vector<8x1xf32> to vector<8x256xf32>
    %89 = arith.addf %87, %88 : vector<8x256xf32>
    %cst_33 = arith.constant 0.000000e+00 : f32
    %90 = vector.broadcast %cst_33 : f32 to vector<8x256xf32>
    %91 = arith.maximumf %89, %90 : vector<8x256xf32>
    %c2_34 = arith.constant 2 : index
    %c0_35 = arith.constant 0 : index
    %c0_36 = arith.constant 0 : index
    %92 = vector.load %arg5[%c2_34, %c0_35, %c0_36] : memref<3x8x1xf32, #tpu.memory_space<vmem>>, vector<1x8x1xf32>
    %93 = vector.shape_cast %92 : vector<1x8x1xf32> to vector<8x1xf32>
    %94 = tpu.concatenate %91, %91 in 1 : vector<8x256xf32>, vector<8x256xf32> -> vector<8x512xf32>
    %95 = vector.extract_strided_slice %94 {offsets = [0, 239], sizes = [8, 256], strides = [1, 1]} : vector<8x512xf32> to vector<8x256xf32>
    %96 = vector.broadcast %1 : vector<1x256xf32> to vector<8x256xf32>
    %97 = arith.mulf %95, %96 : vector<8x256xf32>
    %98 = vector.extract_strided_slice %94 {offsets = [0, 240], sizes = [8, 256], strides = [1, 1]} : vector<8x512xf32> to vector<8x256xf32>
    %99 = vector.broadcast %3 : vector<1x256xf32> to vector<8x256xf32>
    %100 = arith.mulf %98, %99 : vector<8x256xf32>
    %101 = vector.extract_strided_slice %94 {offsets = [0, 241], sizes = [8, 256], strides = [1, 1]} : vector<8x512xf32> to vector<8x256xf32>
    %102 = vector.broadcast %5 : vector<1x256xf32> to vector<8x256xf32>
    %103 = arith.mulf %101, %102 : vector<8x256xf32>
    %104 = vector.extract_strided_slice %94 {offsets = [0, 255], sizes = [8, 256], strides = [1, 1]} : vector<8x512xf32> to vector<8x256xf32>
    %105 = vector.broadcast %7 : vector<1x256xf32> to vector<8x256xf32>
    %106 = arith.mulf %104, %105 : vector<8x256xf32>
    %107 = vector.broadcast %9 : vector<1x256xf32> to vector<8x256xf32>
    %108 = arith.mulf %91, %107 : vector<8x256xf32>
    %109 = vector.extract_strided_slice %94 {offsets = [0, 1], sizes = [8, 256], strides = [1, 1]} : vector<8x512xf32> to vector<8x256xf32>
    %110 = vector.broadcast %11 : vector<1x256xf32> to vector<8x256xf32>
    %111 = arith.mulf %109, %110 : vector<8x256xf32>
    %112 = vector.extract_strided_slice %94 {offsets = [0, 15], sizes = [8, 256], strides = [1, 1]} : vector<8x512xf32> to vector<8x256xf32>
    %113 = vector.broadcast %13 : vector<1x256xf32> to vector<8x256xf32>
    %114 = arith.mulf %112, %113 : vector<8x256xf32>
    %115 = vector.extract_strided_slice %94 {offsets = [0, 16], sizes = [8, 256], strides = [1, 1]} : vector<8x512xf32> to vector<8x256xf32>
    %116 = vector.broadcast %15 : vector<1x256xf32> to vector<8x256xf32>
    %117 = arith.mulf %115, %116 : vector<8x256xf32>
    %118 = vector.extract_strided_slice %94 {offsets = [0, 17], sizes = [8, 256], strides = [1, 1]} : vector<8x512xf32> to vector<8x256xf32>
    %119 = vector.broadcast %17 : vector<1x256xf32> to vector<8x256xf32>
    %120 = arith.mulf %118, %119 : vector<8x256xf32>
    %121 = tpu.concatenate %97, %100, %103, %106, %108, %111, %114, %117, %120 in 0 : vector<8x256xf32>, vector<8x256xf32>, vector<8x256xf32>, vector<8x256xf32>, vector<8x256xf32>, vector<8x256xf32>, vector<8x256xf32>, vector<8x256xf32>, vector<8x256xf32> -> vector<72x256xf32>
    %c0_37 = arith.constant 0 : index
    %c0_38 = arith.constant 0 : index
    %122 = vector.load %arg4[%c0_37, %c0_38] : memref<8x72xf32, #tpu.memory_space<vmem>>, vector<8x72xf32>
    %cst_39 = arith.constant dense<0.000000e+00> : vector<8x256xf32>
    %123 = tpu.matmul %122, %121, %cst_39 {dimension_numbers = #tpu.dot_dimension_numbers<[1], [0], [0], [1], [0, 0, 1, 1], [], []>} : vector<8x72xf32>, vector<72x256xf32>, vector<8x256xf32> -> vector<8x256xf32>
    %124 = vector.broadcast %93 : vector<8x1xf32> to vector<8x256xf32>
    %125 = arith.addf %123, %124 : vector<8x256xf32>
    %126 = arith.addf %125, %55 : vector<8x256xf32>
    %cst_40 = arith.constant 0.000000e+00 : f32
    %127 = vector.broadcast %cst_40 : f32 to vector<8x256xf32>
    %128 = arith.maximumf %126, %127 : vector<8x256xf32>
    %c0_41 = arith.constant 0 : index
    %c0_42 = arith.constant 0 : index
    %c0_43 = arith.constant 0 : index
    %129 = vector.load %arg7[%c0_41, %c0_42, %c0_43] : memref<1x8x256xf32, #tpu.memory_space<vmem>>, vector<1x8x256xf32>
    %130 = vector.shape_cast %129 : vector<1x8x256xf32> to vector<8x256xf32>
    %131 = vector.shape_cast %128 : vector<8x256xf32> to vector<1x8x256xf32>
    tpu.vector_store %arg7[%c0_41, %c0_42, %c0_43], %131 {strides = array<i32>} : memref<1x8x256xf32, #tpu.memory_space<vmem>>, vector<1x8x256xf32>,
    return
  }
  func.func @transform_0(%arg0: i32) -> (i32, i32, i32) {
    %c0_i32 = arith.constant 0 : i32
    %c0_i32_0 = arith.constant 0 : i32
    %c0_i32_1 = arith.constant 0 : i32
    return %arg0, %c0_i32, %c0_i32_0 : i32, i32, i32
  }
  func.func @transform_1(%arg0: i32) -> (i32, i32) {
    %c0_i32 = arith.constant 0 : i32
    %c0_i32_0 = arith.constant 0 : i32
    %c0_i32_1 = arith.constant 0 : i32
    return %c0_i32, %c0_i32_0 : i32, i32
  }
  func.func @transform_2(%arg0: i32) -> (i32, i32) {
    %c0_i32 = arith.constant 0 : i32
    %c0_i32_0 = arith.constant 0 : i32
    %c0_i32_1 = arith.constant 0 : i32
    return %c0_i32, %c0_i32_0 : i32, i32
  }
  func.func @transform_3(%arg0: i32) -> (i32, i32) {
    %c0_i32 = arith.constant 0 : i32
    %c0_i32_0 = arith.constant 0 : i32
    %c0_i32_1 = arith.constant 0 : i32
    return %c0_i32, %c0_i32_0 : i32, i32
  }
  func.func @transform_4(%arg0: i32) -> (i32, i32, i32) {
    %c0_i32 = arith.constant 0 : i32
    %c0_i32_0 = arith.constant 0 : i32
    %c0_i32_1 = arith.constant 0 : i32
    %c0_i32_2 = arith.constant 0 : i32
    return %c0_i32, %c0_i32_0, %c0_i32_1 : i32, i32, i32
  }
  func.func @transform_5(%arg0: i32) -> (i32, i32, i32) {
    %c0_i32 = arith.constant 0 : i32
    %c0_i32_0 = arith.constant 0 : i32
    %c0_i32_1 = arith.constant 0 : i32
    %c0_i32_2 = arith.constant 0 : i32
    return %c0_i32, %c0_i32_0, %c0_i32_1 : i32, i32, i32
  }
  func.func @transform_6(%arg0: i32) -> (i32, i32, i32) {
    %c0_i32 = arith.constant 0 : i32
    %c0_i32_0 = arith.constant 0 : i32
    %c0_i32_1 = arith.constant 0 : i32
    return %arg0, %c0_i32, %c0_i32_0 : i32, i32, i32
  }
}

</mosaic_0001>

<llo_original>
// kernel: tpu_custom_call.1
$region0: #{tpu_custom_call.1}
  #allocation0 [shape = 'u32[]', space=smem, size = 0x4, offset = 0x4, fixed_abs, tag = 'smem constant byte address 0x4 - core index']
  #allocation1 [shape = 'u32[144,128]{1,0:T(1,128)}', space=vmem, size = 0x12000, scoped, tag = 'internal scratch']
  %s0 = inlined_call_operand.hbm [shape: f32[2,8,256], index: 0, kind: input, shape index: {}]
  %s1 = inlined_call_operand.vmem [shape: f32[8,72], index: 1, kind: input, shape index: {}]
  %s2 = inlined_call_operand.vmem [shape: f32[8,72], index: 2, kind: input, shape index: {}]
  %s3 = inlined_call_operand.hbm [shape: f32[8,72], index: 3, kind: input, shape index: {}]
  %s4 = inlined_call_operand.vmem [shape: f32[3,8,1], index: 4, kind: input, shape index: {}]
  %s5 = inlined_call_operand.vmem [shape: f32[9,1,256], index: 5, kind: input, shape index: {}]
  %s6 = inlined_call_operand.hbm [shape: f32[2,8,256], index: 6, kind: output, shape index: {}]
  %s7 = sld [smem:[#allocation0]]
  $region65: #{tpu_custom_call.1} parent=0
    _
  %s9 = ssub.s32 1, %s7
  %s10 = scalar_select 0, %s9, %s7
  $region1: #{tpu_custom_call.1} parent=0
    #allocation2 [shape = 'u8[16384]{0}', space=vmem, size = 0x4000, scoped, tag = 'input window, operand 0']
    #allocation3 [shape = 's32[2]{0}', space=sflag, size = 0x8, scoped, tag = 'scoped memory for tpu_custom_call.1']
    #allocation4 [shape = 's32[2]{0}', space=sflag, size = 0x8, scoped, tag = 'scoped memory for tpu_custom_call.1']
    #allocation5 [shape = 'u8[4096]{0}', space=vmem, size = 0x1000, scoped, tag = 'input window, operand 3, single buffered']
    #allocation6 [shape = 's32[1]{0}', space=sflag, size = 0x4, scoped, tag = 'scoped memory for tpu_custom_call.1']
    #allocation7 [shape = 'u8[16384]{0}', space=vmem, size = 0x4000, scoped, tag = 'output window, operand 0']
    %11 = vsyncpa [#allocation3], 0
    %s12 = scalar_lea.sflag [#allocation3], 1
    %13 = vsyncpa %s12, 0
    %14 = vsyncpa [#allocation6], 0
    %15 = vsyncpa [#allocation4], 0
    %s16 = scalar_lea.sflag [#allocation4], 1
    %17 = vsyncpa %s16, 0
    loop: start=0, step=1, limit=4
    $region2: #{tpu_custom_call.1} parent=1 // loop_pre_header
      _
    $region3: #{tpu_custom_call.1} parent=1 // loop_header
      %s19 = sphi 0, %s23
      %p20 = scmp.ge.s32.totalorder %s19, 4
      %s29 = sphi 0, %s31
      %s32 = sphi 0, %s29
      %s33 = sphi 0, %s32
      %s49 = sphi 0, %s33
      %s53 = sphi 0, %s53
      %s55 = sphi 0, %s53
      %s56 = sphi 0, %s55
      %s70 = sphi 0, %s56
      %s74 = sphi 0, %s74
      %s76 = sphi 0, %s74
      %s77 = sphi 0, %s76
      %s91 = sphi 0, %s77
      %s95 = sphi 0, %s95
      %s97 = sphi 0, %s95
      %s98 = sphi 0, %s97
      %s112 = sphi 0, %s98
      %s116 = sphi 0, %s116
      %s118 = sphi 0, %s116
      %s119 = sphi 0, %s118
      %s133 = sphi 0, %s119
      %s137 = sphi 0, %s137
      %s139 = sphi 0, %s137
      %s140 = sphi 0, %s139
      %s154 = sphi 0, %s140
      %s160 = sphi 0, %s162
      %s163 = sphi 0, %s160
      %s164 = sphi 0, %s163
      %s180 = sphi 0, %s164
    $region4: #{tpu_custom_call.1} parent=1 // loop_header_branch
      %22 = sbr.rel (%p20) target = $region8
    $region5: #{tpu_custom_call.1} parent=1 // loop_body
      %s24 = ssub.s32 %s19, 1
      %s25 = ssub.s32 %s19, 2
      %s26 = sadd.s32 %s19, 1
      %s27 = ssub.s32 %s19, %s26
      %p28 = scmp.eq.s32.totalorder %s27, 0
      %s30 = sadd.s32 %s29, 1
      %s31 = scalar_select %p28, %s29, %s30
      %p34 = pneg %p28
      %p35 = scmp.eq.s32.totalorder %s19, 1
      %p36 = por %p34, %p35
      %p37 = scmp.ne.s32.totalorder %s29, %s32
      %p38 = scmp.eq.s32.totalorder %s19, 0
      %p39 = por %p37, %p38
      %p40 = scmp.ne.s32.totalorder %s29, %s32
      %p41 = scmp.eq.s32.totalorder %s24, 1
      %p42 = por %p40, %p41
      %p43 = scmp.ne.s32.totalorder %s32, %s33
      %p44 = scmp.eq.s32.totalorder %s24, 0
      %p45 = por %p43, %p44
      %p46 = scmp.ne.s32.totalorder %s32, %s33
      %p47 = scmp.eq.s32.totalorder %s25, 1
      %p48 = por %p46, %p47
      %p50 = scmp.ne.s32.totalorder %s33, %s49
      %p51 = scmp.eq.s32.totalorder %s25, 0
      %p52 = por %p50, %p51
      %s54 = sadd.s32 %s53, 1
      %p57 = scmp.eq.s32.totalorder %s19, 1
      %p58 = scmp.ne.s32.totalorder %s53, %s55
      %p59 = scmp.eq.s32.totalorder %s19, 0
      %p60 = por %p58, %p59
      %p61 = scmp.ne.s32.totalorder %s53, %s55
      %p62 = scmp.eq.s32.totalorder %s24, 1
      %p63 = por %p61, %p62
      %p64 = scmp.ne.s32.totalorder %s55, %s56
      %p65 = scmp.eq.s32.totalorder %s24, 0
      %p66 = por %p64, %p65
      %p67 = scmp.ne.s32.totalorder %s55, %s56
      %p68 = scmp.eq.s32.totalorder %s25, 1
      %p69 = por %p67, %p68
      %p71 = scmp.ne.s32.totalorder %s56, %s70
      %p72 = scmp.eq.s32.totalorder %s25, 0
      %p73 = por %p71, %p72
      %s75 = sadd.s32 %s74, 1
      %p78 = scmp.eq.s32.totalorder %s19, 1
      %p79 = scmp.ne.s32.totalorder %s74, %s76
      %p80 = scmp.eq.s32.totalorder %s19, 0
      %p81 = por %p79, %p80
      %p82 = scmp.ne.s32.totalorder %s74, %s76
      %p83 = scmp.eq.s32.totalorder %s24, 1
      %p84 = por %p82, %p83
      %p85 = scmp.ne.s32.totalorder %s76, %s77
      %p86 = scmp.eq.s32.totalorder %s24, 0
      %p87 = por %p85, %p86
      %p88 = scmp.ne.s32.totalorder %s76, %s77
      %p89 = scmp.eq.s32.totalorder %s25, 1
      %p90 = por %p88, %p89
      %p92 = scmp.ne.s32.totalorder %s77, %s91
      %p93 = scmp.eq.s32.totalorder %s25, 0
      %p94 = por %p92, %p93
      %s96 = sadd.s32 %s95, 1
      %p99 = scmp.eq.s32.totalorder %s19, 1
      %p100 = scmp.ne.s32.totalorder %s95, %s97
      %p101 = scmp.eq.s32.totalorder %s19, 0
      %p102 = por %p100, %p101
      %p103 = scmp.ne.s32.totalorder %s95, %s97
      %p104 = scmp.eq.s32.totalorder %s24, 1
      %p105 = por %p103, %p104
      %p106 = scmp.ne.s32.totalorder %s97, %s98
      %p107 = scmp.eq.s32.totalorder %s24, 0
      %p108 = por %p106, %p107
      %p109 = scmp.ne.s32.totalorder %s97, %s98
      %p110 = scmp.eq.s32.totalorder %s25, 1
      %p111 = por %p109, %p110
      %p113 = scmp.ne.s32.totalorder %s98, %s112
      %p114 = scmp.eq.s32.totalorder %s25, 0
      %p115 = por %p113, %p114
      %s117 = sadd.s32 %s116, 1
      %p120 = scmp.eq.s32.totalorder %s19, 1
      %p121 = scmp.ne.s32.totalorder %s116, %s118
      %p122 = scmp.eq.s32.totalorder %s19, 0
      %p123 = por %p121, %p122
      %p124 = scmp.ne.s32.totalorder %s116, %s118
      %p125 = scmp.eq.s32.totalorder %s24, 1
      %p126 = por %p124, %p125
      %p127 = scmp.ne.s32.totalorder %s118, %s119
      %p128 = scmp.eq.s32.totalorder %s24, 0
      %p129 = por %p127, %p128
      %p130 = scmp.ne.s32.totalorder %s118, %s119
      %p131 = scmp.eq.s32.totalorder %s25, 1
      %p132 = por %p130, %p131
      %p134 = scmp.ne.s32.totalorder %s119, %s133
      %p135 = scmp.eq.s32.totalorder %s25, 0
      %p136 = por %p134, %p135
      %s138 = sadd.s32 %s137, 1
      %p141 = scmp.eq.s32.totalorder %s19, 1
      %p142 = scmp.ne.s32.totalorder %s137, %s139
      %p143 = scmp.eq.s32.totalorder %s19, 0
      %p144 = por %p142, %p143
      %p145 = scmp.ne.s32.totalorder %s137, %s139
      %p146 = scmp.eq.s32.totalorder %s24, 1
      %p147 = por %p145, %p146
      %p148 = scmp.ne.s32.totalorder %s139, %s140
      %p149 = scmp.eq.s32.totalorder %s24, 0
      %p150 = por %p148, %p149
      %p151 = scmp.ne.s32.totalorder %s139, %s140
      %p152 = scmp.eq.s32.totalorder %s25, 1
      %p153 = por %p151, %p152
      %p155 = scmp.ne.s32.totalorder %s140, %s154
      %p156 = scmp.eq.s32.totalorder %s25, 0
      %p157 = por %p155, %p156
      %s158 = ssub.s32 %s19, %s26
      %p159 = scmp.eq.s32.totalorder %s158, 0
      %s161 = sadd.s32 %s160, 1
      %s162 = scalar_select %p159, %s160, %s161
      %p165 = pneg %p159
      %p166 = scmp.eq.s32.totalorder %s19, 1
      %p167 = por %p165, %p166
      %p168 = scmp.ne.s32.totalorder %s160, %s163
      %p169 = scmp.eq.s32.totalorder %s19, 0
      %p170 = por %p168, %p169
      %p171 = scmp.ne.s32.totalorder %s160, %s163
      %p172 = scmp.eq.s32.totalorder %s24, 1
      %p173 = por %p171, %p172
      %p174 = scmp.ne.s32.totalorder %s163, %s164
      %p175 = scmp.eq.s32.totalorder %s24, 0
      %p176 = por %p174, %p175
      %p177 = scmp.ne.s32.totalorder %s163, %s164
      %p178 = scmp.eq.s32.totalorder %s25, 1
      %p179 = por %p177, %p178
      %p181 = scmp.ne.s32.totalorder %s164, %s180
      %p182 = scmp.eq.s32.totalorder %s25, 0
      %p183 = por %p181, %p182
      %p184 = scmp.le.s32.totalorder 1, %s19
      %p185 = scmp.lt.s32.totalorder %s19, 3
      %p186 = pnand %p184, %p185
      %p187 = pneg %p186
      // Predicated region
      $region9: #{tpu_custom_call.1} parent=5 // pred_check
        _
      $region10: #{tpu_custom_call.1} parent=5 // pred_check_branch
        %189 = sbr.rel (%p186) target = $region12
      $region11: #{tpu_custom_call.1} parent=5 // pred_region
        %s190 = ssub.s32 %s19, 1
        // Predicated region
        $region13: #{tpu_custom_call.1} parent=11 // pred_check
          %p191 = pneg %p66
        $region14: #{tpu_custom_call.1} parent=11 // pred_check_branch
          %193 = sbr.rel (%p191) target = $region16
        $region15: #{tpu_custom_call.1} parent=11 // pred_region
          _
        $region16: #{tpu_custom_call.1} parent=11 // pred_fallthru
          _
        // Predicated region
        $region17: #{tpu_custom_call.1} parent=11 // pred_check
          %p194 = pneg %p87
        $region18: #{tpu_custom_call.1} parent=11 // pred_check_branch
          %196 = sbr.rel (%p194) target = $region20
        $region19: #{tpu_custom_call.1} parent=11 // pred_region
          _
        $region20: #{tpu_custom_call.1} parent=11 // pred_fallthru
          _
        // Predicated region
        $region21: #{tpu_custom_call.1} parent=11 // pred_check
          %p197 = pneg %p108
        $region22: #{tpu_custom_call.1} parent=11 // pred_check_branch
          %199 = sbr.rel (%p197) target = $region24
        $region23: #{tpu_custom_call.1} parent=11 // pred_region
          %s201 = ssub.s32 128, 128
          %202 = vsyncadd [#allocation6], %s201
          %s204 = sshll.u32 [#allocation5], 4
          %s205 = int_to_ptr.vmem [resolvable:$true] %s204
          %207 = dma.hbm_to_vmem [thread:$0]  %s3, 128, %s205, [#allocation6]
        $region24: #{tpu_custom_call.1} parent=11 // pred_fallthru
          _
        // Predicated region
        $region25: #{tpu_custom_call.1} parent=11 // pred_check
          %p208 = pneg %p129
        $region26: #{tpu_custom_call.1} parent=11 // pred_check_branch
          %210 = sbr.rel (%p208) target = $region28
        $region27: #{tpu_custom_call.1} parent=11 // pred_region
          _
        $region28: #{tpu_custom_call.1} parent=11 // pred_fallthru
          _
        // Predicated region
        $region29: #{tpu_custom_call.1} parent=11 // pred_check
          %p211 = pneg %p150
        $region30: #{tpu_custom_call.1} parent=11 // pred_check_branch
          %213 = sbr.rel (%p211) target = $region32
        $region31: #{tpu_custom_call.1} parent=11 // pred_region
          _
        $region32: #{tpu_custom_call.1} parent=11 // pred_fallthru
          _
      $region12: #{tpu_custom_call.1} parent=5 // pred_fallthru
        _
      %p214 = scmp.lt.s32.totalorder %s19, 2
      // Predicated region
      $region33: #{tpu_custom_call.1} parent=5 // pred_check
        %p215 = pneg %p214
      $region34: #{tpu_custom_call.1} parent=5 // pred_check_branch
        %217 = sbr.rel (%p215) target = $region36
      $region35: #{tpu_custom_call.1} parent=5 // pred_region
        // Predicated region
        $region37: #{tpu_custom_call.1} parent=35 // pred_check
          %p218 = pneg %p39
        $region38: #{tpu_custom_call.1} parent=35 // pred_check_branch
          %220 = sbr.rel (%p218) target = $region40
        $region39: #{tpu_custom_call.1} parent=35 // pred_region
          %s221 = sand.u32 %s29, 1
          %s222 = scalar_lea.sflag [#allocation3], %s221
          %s223 = sand.u32 %s29, 1
          %s224 = smul.addr %s223, 16
          %s225 = scalar_lea.vmem [#allocation2], %s224
          %s227 = ssub.s32 256, 256
          %228 = vsyncadd %s222, %s227
          %s229 = smul.addr %s19, 2
          %s230 = smul.addr %s229, 128
          %s231 = scalar_lea.hbm %s0, %s230
          %s233 = sshll.u32 %s225, 4
          %s234 = int_to_ptr.vmem [resolvable:$true] %s233
          %236 = dma.hbm_to_vmem [thread:$0]  %s231, 256, %s234, %s222
        $region40: #{tpu_custom_call.1} parent=35 // pred_fallthru
          _
      $region36: #{tpu_custom_call.1} parent=5 // pred_fallthru
        _
      %p237 = scmp.le.s32.totalorder 1, %s19
      %p238 = scmp.lt.s32.totalorder %s19, 3
      %p239 = pnand %p237, %p238
      %p240 = pneg %p239
      // Predicated region
      $region41: #{tpu_custom_call.1} parent=5 // pred_check
        _
      $region42: #{tpu_custom_call.1} parent=5 // pred_check_branch
        %242 = sbr.rel (%p239) target = $region44
      $region43: #{tpu_custom_call.1} parent=5 // pred_region
        %s243 = ssub.s32 %s19, 1
        %s244 = sand.u32 %s32, 1
        %s245 = scalar_lea.sflag [#allocation3], %s244
        %s246 = sand.u32 %s32, 1
        %s247 = smul.addr %s246, 16
        %s248 = scalar_lea.vmem [#allocation2], %s247
        // Predicated region
        $region45: #{tpu_custom_call.1} parent=43 // pred_check
          %p249 = pneg %p45
        $region46: #{tpu_custom_call.1} parent=43 // pred_check_branch
          %251 = sbr.rel (%p249) target = $region48
        $region47: #{tpu_custom_call.1} parent=43 // pred_region
          %252 = dma.done %s245, 256
        $region48: #{tpu_custom_call.1} parent=43 // pred_fallthru
          _
        // Predicated region
        $region49: #{tpu_custom_call.1} parent=43 // pred_check
          %p253 = pneg %p108
        $region50: #{tpu_custom_call.1} parent=43 // pred_check_branch
          %255 = sbr.rel (%p253) target = $region52
        $region51: #{tpu_custom_call.1} parent=43 // pred_region
          %256 = dma.done [#allocation6], 128
        $region52: #{tpu_custom_call.1} parent=43 // pred_fallthru
          _
        %s257 = sand.u32 %s32, 1
        %s258 = scalar_lea.sflag [#allocation3], %s257
        %s259 = sand.u32 %s32, 1
        %s260 = smul.addr %s259, 16
        %s261 = scalar_lea.vmem [#allocation2], %s260
        %p262 = pneg %p45
        %p263 = pneg %p42
        %p264 = pneg %p66
        %p265 = pneg %p63
        %p266 = pneg %p87
        %p267 = pneg %p84
        %p268 = pneg %p108
        %p269 = pneg %p105
        %p270 = pneg %p129
        %p271 = pneg %p126
        %p272 = pneg %p150
        %p273 = pneg %p147
        %p274 = pneg %p176
        %p275 = pneg %p173
        %s276 = sand.u32 %s163, 1
        %s277 = scalar_lea.sflag [#allocation4], %s276
        %s278 = sand.u32 %s163, 1
        %s279 = smul.addr %s278, 16
        %s280 = scalar_lea.vmem [#allocation7], %s279
        %v281 = vld [vmem:[%s5] sm:$0x3]
        %s282 = scalar_lea.vmem %s5, 2
        %v283 = vld [vmem:[%s282] sm:$0x3]
        %s284 = scalar_lea.vmem %s5, 4
        %v285 = vld [vmem:[%s284] sm:$0x3]
        %s286 = scalar_lea.vmem %s5, 6
        %v287 = vld [vmem:[%s286] sm:$0x3]
        %s288 = scalar_lea.vmem %s5, 8
        %v289 = vld [vmem:[%s288] sm:$0x3]
        %s290 = scalar_lea.vmem %s5, 10
        %v291 = vld [vmem:[%s290] sm:$0x3]
        %s292 = scalar_lea.vmem %s5, 12
        %v293 = vld [vmem:[%s292] sm:$0x3]
        %s294 = scalar_lea.vmem %s5, 14
        %v295 = vld [vmem:[%s294] sm:$0x3]
        %s296 = scalar_lea.vmem %s5, 16
        %v297 = vld [vmem:[%s296] sm:$0x3]
        %v298 = vld [vmem:[%s248] sm:$0xff]
        %v299 = vld [vmem:[%s248 + $0x8] sm:$0xff]
        %v300 = vld [vmem:[%s4] sm:$0xff]
        %v302 = vlaneseq
        %v303 = vshrl.u32 %v302, 7
        %v304 = vsub.s32 0, %v303
        %v305 = vrot.slane %v281, %v304
        %v306 = vlaneseq
        %v307 = vshrl.u32 %v306, 7
        %v308 = vsub.s32 1, %v307
        %v309 = vrot.slane %v281, %v308
        %310 = vrot.lane.b32.xlu0 %v305, 111
        %v311 = vpop.permute.xlu0 %310
        %312 = vrot.lane.b32.xlu0 %v309, 111
        %v313 = vpop.permute.xlu0 %312
        %vm314 = vcmask 908288
        %v315 = vsel %vm314, %v311, %v313
        %v319 = vmul.f32 %v299, %v311
        %v320 = vmul.f32 %v298, %v315
        %v321 = vmul.f32 %v299, %v313
        %v323 = vlaneseq
        %v324 = vshrl.u32 %v323, 7
        %v325 = vsub.s32 0, %v324
        %v326 = vrot.slane %v283, %v325
        %v327 = vlaneseq
        %v328 = vshrl.u32 %v327, 7
        %v329 = vsub.s32 1, %v328
        %v330 = vrot.slane %v283, %v329
        %331 = vrot.lane.b32.xlu0 %v326, 112
        %v332 = vpop.permute.xlu0 %331
        %333 = vrot.lane.b32.xlu0 %v330, 112
        %v334 = vpop.permute.xlu0 %333
        %vm335 = vcmask 916480
        %v336 = vsel %vm335, %v332, %v334
        %v340 = vmul.f32 %v299, %v332
        %v341 = vmul.f32 %v298, %v336
        %v342 = vmul.f32 %v299, %v334
        %v344 = vlaneseq
        %v345 = vshrl.u32 %v344, 7
        %v346 = vsub.s32 0, %v345
        %v347 = vrot.slane %v285, %v346
        %v348 = vlaneseq
        %v349 = vshrl.u32 %v348, 7
        %v350 = vsub.s32 1, %v349
        %v351 = vrot.slane %v285, %v350
        %352 = vrot.lane.b32.xlu0 %v347, 113
        %v353 = vpop.permute.xlu0 %352
        %354 = vrot.lane.b32.xlu0 %v351, 113
        %v355 = vpop.permute.xlu0 %354
        %vm356 = vcmask 924672
        %v357 = vsel %vm356, %v353, %v355
        %v361 = vmul.f32 %v299, %v353
        %v362 = vmul.f32 %v298, %v357
        %v363 = vmul.f32 %v299, %v355
        %v365 = vlaneseq
        %v366 = vshrl.u32 %v365, 7
        %v367 = vsub.s32 0, %v366
        %v368 = vrot.slane %v287, %v367
        %v369 = vlaneseq
        %v370 = vshrl.u32 %v369, 7
        %v371 = vsub.s32 1, %v370
        %v372 = vrot.slane %v287, %v371
        %373 = vrot.lane.b32.xlu0 %v368, 127
        %v374 = vpop.permute.xlu0 %373
        %375 = vrot.lane.b32.xlu0 %v372, 127
        %v376 = vpop.permute.xlu0 %375
        %vm377 = vcmask 1039360
        %v378 = vsel %vm377, %v374, %v376
        %v382 = vmul.f32 %v299, %v374
        %v383 = vmul.f32 %v298, %v378
        %v384 = vmul.f32 %v299, %v376
        %v386 = vlaneseq
        %v387 = vshrl.u32 %v386, 7
        %v388 = vsub.s32 0, %v387
        %v389 = vrot.slane %v289, %v388
        %v390 = vlaneseq
        %v391 = vshrl.u32 %v390, 7
        %v392 = vsub.s32 1, %v391
        %v393 = vrot.slane %v289, %v392
        %v396 = vmul.f32 %v298, %v389
        %v397 = vmul.f32 %v299, %v393
        %v399 = vlaneseq
        %v400 = vshrl.u32 %v399, 7
        %v401 = vsub.s32 0, %v400
        %v402 = vrot.slane %v291, %v401
        %v403 = vlaneseq
        %v404 = vshrl.u32 %v403, 7
        %v405 = vsub.s32 1, %v404
        %v406 = vrot.slane %v291, %v405
        %407 = vrot.lane.b32.xlu0 %v402, 1
        %v408 = vpop.permute.xlu0 %407
        %409 = vrot.lane.b32.xlu0 %v406, 1
        %v410 = vpop.permute.xlu0 %409
        %vm411 = vcmask 7168
        %v412 = vsel %vm411, %v408, %v410
        %v416 = vmul.f32 %v298, %v408
        %v417 = vmul.f32 %v299, %v412
        %v418 = vmul.f32 %v298, %v410
        %v420 = vlaneseq
        %v421 = vshrl.u32 %v420, 7
        %v422 = vsub.s32 0, %v421
        %v423 = vrot.slane %v293, %v422
        %v424 = vlaneseq
        %v425 = vshrl.u32 %v424, 7
        %v426 = vsub.s32 1, %v425
        %v427 = vrot.slane %v293, %v426
        %428 = vrot.lane.b32.xlu0 %v423, 15
        %v429 = vpop.permute.xlu0 %428
        %430 = vrot.lane.b32.xlu0 %v427, 15
        %v431 = vpop.permute.xlu0 %430
        %vm432 = vcmask 121856
        %v433 = vsel %vm432, %v429, %v431
        %v437 = vmul.f32 %v298, %v429
        %v438 = vmul.f32 %v299, %v433
        %v439 = vmul.f32 %v298, %v431
        %v441 = vlaneseq
        %v442 = vshrl.u32 %v441, 7
        %v443 = vsub.s32 0, %v442
        %v444 = vrot.slane %v295, %v443
        %v445 = vlaneseq
        %v446 = vshrl.u32 %v445, 7
        %v447 = vsub.s32 1, %v446
        %v448 = vrot.slane %v295, %v447
        %449 = vrot.lane.b32.xlu0 %v444, 16
        %v450 = vpop.permute.xlu0 %449
        %451 = vrot.lane.b32.xlu0 %v448, 16
        %v452 = vpop.permute.xlu0 %451
        %vm453 = vcmask 130048
        %v454 = vsel %vm453, %v450, %v452
        %v458 = vmul.f32 %v298, %v450
        %v459 = vmul.f32 %v299, %v454
        %v460 = vmul.f32 %v298, %v452
        %v462 = vlaneseq
        %v463 = vshrl.u32 %v462, 7
        %v464 = vsub.s32 0, %v463
        %v465 = vrot.slane %v297, %v464
        %v466 = vlaneseq
        %v467 = vshrl.u32 %v466, 7
        %v468 = vsub.s32 1, %v467
        %v469 = vrot.slane %v297, %v468
        %470 = vrot.lane.b32.xlu0 %v465, 17
        %v471 = vpop.permute.xlu0 %470
        %472 = vrot.lane.b32.xlu0 %v469, 17
        %v473 = vpop.permute.xlu0 %472
        %vm474 = vcmask 138240
        %v475 = vsel %vm474, %v471, %v473
        %v479 = vmul.f32 %v298, %v471
        %v480 = vmul.f32 %v299, %v475
        %v481 = vmul.f32 %v298, %v473
        %485 = vrot.lane.b32.xlu0 %v340, 127
        %v486 = vpop.permute.xlu0 %485
        %487 = vrot.lane.b32.xlu0 %v341, 127
        %v488 = vpop.permute.xlu0 %487
        %489 = vrot.lane.b32.xlu0 %v342, 127
        %v490 = vpop.permute.xlu0 %489
        %v491 = vsel %vm377, %v486, %v488
        %v492 = vsel %vm377, %v488, %v490
        %496 = vrot.lane.b32.xlu0 %v361, 126
        %v497 = vpop.permute.xlu0 %496
        %498 = vrot.lane.b32.xlu0 %v362, 126
        %v499 = vpop.permute.xlu0 %498
        %500 = vrot.lane.b32.xlu0 %v363, 126
        %v501 = vpop.permute.xlu0 %500
        %vm502 = vcmask 1031168
        %v503 = vsel %vm502, %v497, %v499
        %v504 = vsel %vm502, %v499, %v501
        %508 = vrot.lane.b32.xlu0 %v382, 112
        %v509 = vpop.permute.xlu0 %508
        %510 = vrot.lane.b32.xlu0 %v383, 112
        %v511 = vpop.permute.xlu0 %510
        %512 = vrot.lane.b32.xlu0 %v384, 112
        %v513 = vpop.permute.xlu0 %512
        %v514 = vsel %vm335, %v509, %v511
        %v515 = vsel %vm335, %v511, %v513
        %518 = vrot.lane.b32.xlu0 %v396, 111
        %v519 = vpop.permute.xlu0 %518
        %520 = vrot.lane.b32.xlu0 %v397, 111
        %v521 = vpop.permute.xlu0 %520
        %v522 = vsel %vm314, %v519, %v521
        %526 = vrot.lane.b32.xlu0 %v416, 110
        %v527 = vpop.permute.xlu0 %526
        %528 = vrot.lane.b32.xlu0 %v417, 110
        %v529 = vpop.permute.xlu0 %528
        %530 = vrot.lane.b32.xlu0 %v418, 110
        %v531 = vpop.permute.xlu0 %530
        %vm532 = vcmask 900096
        %v533 = vsel %vm532, %v527, %v529
        %v534 = vsel %vm532, %v529, %v531
        %538 = vrot.lane.b32.xlu0 %v437, 96
        %v539 = vpop.permute.xlu0 %538
        %540 = vrot.lane.b32.xlu0 %v438, 96
        %v541 = vpop.permute.xlu0 %540
        %542 = vrot.lane.b32.xlu0 %v439, 96
        %v543 = vpop.permute.xlu0 %542
        %vm544 = vcmask 785408
        %v545 = vsel %vm544, %v539, %v541
        %v546 = vsel %vm544, %v541, %v543
        %550 = vrot.lane.b32.xlu0 %v458, 95
        %v551 = vpop.permute.xlu0 %550
        %552 = vrot.lane.b32.xlu0 %v459, 95
        %v553 = vpop.permute.xlu0 %552
        %554 = vrot.lane.b32.xlu0 %v460, 95
        %v555 = vpop.permute.xlu0 %554
        %vm556 = vcmask 777216
        %v557 = vsel %vm556, %v551, %v553
        %v558 = vsel %vm556, %v553, %v555
        %562 = vrot.lane.b32.xlu0 %v479, 94
        %v563 = vpop.permute.xlu0 %562
        %564 = vrot.lane.b32.xlu0 %v480, 94
        %v565 = vpop.permute.xlu0 %564
        %566 = vrot.lane.b32.xlu0 %v481, 94
        %v567 = vpop.permute.xlu0 %566
        %vm568 = vcmask 769024
        %v569 = vsel %vm568, %v563, %v565
        %v570 = vsel %vm568, %v565, %v567
        %v571 = vld [vmem:[%s1] sm:$0xff]
        %573 = vset.pattern.permute.xlu0 0
        %574 = vperm.xlu0 %573, %v300
        %v575 = vpop.permute.xlu0 %574
        %580 = vrot.lane.b32.xlu0 %v319, 17
        %v581 = vpop.permute.xlu0 %580
        %582 = vrot.lane.b32.xlu0 %v320, 17
        %v583 = vpop.permute.xlu0 %582
        %584 = vrot.lane.b32.xlu0 %v321, 17
        %v585 = vpop.permute.xlu0 %584
        %586 = vrot.lane.b32.xlu0 %v491, 17
        %v587 = vpop.permute.xlu0 %586
        %588 = vrot.lane.b32.xlu0 %v492, 17
        %v589 = vpop.permute.xlu0 %588
        %590 = vrot.lane.b32.xlu0 %v490, 17
        %v591 = vpop.permute.xlu0 %590
        %592 = vrot.lane.b32.xlu0 %v503, 17
        %v593 = vpop.permute.xlu0 %592
        %594 = vrot.lane.b32.xlu0 %v504, 17
        %v595 = vpop.permute.xlu0 %594
        %596 = vrot.lane.b32.xlu0 %v501, 17
        %v597 = vpop.permute.xlu0 %596
        %598 = vrot.lane.b32.xlu0 %v514, 17
        %v599 = vpop.permute.xlu0 %598
        %600 = vrot.lane.b32.xlu0 %v515, 17
        %v601 = vpop.permute.xlu0 %600
        %602 = vrot.lane.b32.xlu0 %v513, 17
        %v603 = vpop.permute.xlu0 %602
        %604 = vrot.lane.b32.xlu0 %v519, 17
        %v605 = vpop.permute.xlu0 %604
        %606 = vrot.lane.b32.xlu0 %v522, 17
        %v607 = vpop.permute.xlu0 %606
        %608 = vrot.lane.b32.xlu0 %v521, 17
        %v609 = vpop.permute.xlu0 %608
        %610 = vrot.lane.b32.xlu0 %v527, 17
        %v611 = vpop.permute.xlu0 %610
        %612 = vrot.lane.b32.xlu0 %v533, 17
        %v613 = vpop.permute.xlu0 %612
        %614 = vrot.lane.b32.xlu0 %v534, 17
        %v615 = vpop.permute.xlu0 %614
        %616 = vrot.lane.b32.xlu0 %v539, 17
        %v617 = vpop.permute.xlu0 %616
        %618 = vrot.lane.b32.xlu0 %v545, 17
        %v619 = vpop.permute.xlu0 %618
        %620 = vrot.lane.b32.xlu0 %v546, 17
        %v621 = vpop.permute.xlu0 %620
        %622 = vrot.lane.b32.xlu0 %v551, 17
        %v623 = vpop.permute.xlu0 %622
        %624 = vrot.lane.b32.xlu0 %v557, 17
        %v625 = vpop.permute.xlu0 %624
        %626 = vrot.lane.b32.xlu0 %v558, 17
        %v627 = vpop.permute.xlu0 %626
        %628 = vrot.lane.b32.xlu0 %v563, 17
        %v629 = vpop.permute.xlu0 %628
        %630 = vrot.lane.b32.xlu0 %v569, 17
        %v631 = vpop.permute.xlu0 %630
        %632 = vrot.lane.b32.xlu0 %v570, 17
        %v633 = vpop.permute.xlu0 %632
        %v634 = vsel %vm474, %v581, %v583
        %v635 = vsel %vm474, %v583, %v585
        %v636 = vsel %vm474, %v587, %v589
        %v637 = vsel %vm474, %v589, %v591
        %v638 = vsel %vm474, %v593, %v595
        %v639 = vsel %vm474, %v595, %v597
        %v640 = vsel %vm474, %v599, %v601
        %v641 = vsel %vm474, %v601, %v603
        %v642 = vsel %vm474, %v605, %v607
        %v643 = vsel %vm474, %v607, %v609
        %v644 = vsel %vm474, %v611, %v613
        %v645 = vsel %vm474, %v613, %v615
        %v646 = vsel %vm474, %v617, %v619
        %v647 = vsel %vm474, %v619, %v621
        %v648 = vsel %vm474, %v623, %v625
        %v649 = vsel %vm474, %v625, %v627
        %v650 = vsel %vm474, %v629, %v631
        %v651 = vsel %vm474, %v631, %v633
        %vm670 = vcmask 588800
        %v672 = vsel %vm670, %v571, 0
        %674 = vmatprep.subr.mxu0 0.0
        %675 = vmatpush1.msra.mxu0 0.0
        %676 = vmatprep.subr.mxu0 0.0
        %677 = vmatpush1.msra.mxu0 0.0
        %678 = vmatprep.subr.mxu0 0.0
        %679 = vmatpush1.msra.mxu0 0.0
        %680 = vmatprep.subr.mxu0 0.0
        %681 = vmatpush1.msra.mxu0 0.0
        %682 = vmatprep.subr.mxu0 0.0
        %683 = vmatpush1.msra.mxu0 0.0
        %684 = vmatprep.subr.mxu0 0.0
        %685 = vmatpush1.msra.mxu0 0.0
        %686 = vmatprep.subr.mxu0 0.0
        %687 = vmatpush1.msra.mxu0 0.0
        %688 = vmatprep.subr.mxu0 %v651
        %689 = vmatpush1.msra.mxu0 %v650
        %690 = vmatprep.subr.mxu0 %v649
        %691 = vmatpush1.msra.mxu0 %v648
        %692 = vmatprep.subr.mxu0 %v647
        %693 = vmatpush1.msra.mxu0 %v646
        %694 = vmatprep.subr.mxu0 %v645
        %695 = vmatpush1.msra.mxu0 %v644
        %696 = vmatprep.subr.mxu0 %v643
        %697 = vmatpush1.msra.mxu0 %v642
        %698 = vmatprep.subr.mxu0 %v641
        %699 = vmatpush1.msra.mxu0 %v640
        %700 = vmatprep.subr.mxu0 %v639
        %701 = vmatpush1.msra.mxu0 %v638
        %702 = vmatprep.subr.mxu0 %v637
        %703 = vmatpush1.msra.mxu0 %v636
        %704 = vmatprep.subr.mxu0 %v635
        %705 = vmatpush1.msra.mxu0 %v634
        %706 = vmatprep.subr.mxu0 0.0
        %707 = vmatpush2.msra.mxu0 0.0
        %708 = vmatprep.subr.mxu0 0.0
        %709 = vmatpush2.msra.mxu0 0.0
        %710 = vmatprep.subr.mxu0 0.0
        %711 = vmatpush2.msra.mxu0 0.0
        %712 = vmatprep.subr.mxu0 0.0
        %713 = vmatpush2.msra.mxu0 0.0
        %714 = vmatprep.subr.mxu0 0.0
        %715 = vmatpush2.msra.mxu0 0.0
        %716 = vmatprep.subr.mxu0 0.0
        %717 = vmatpush2.msra.mxu0 0.0
        %718 = vmatprep.subr.mxu0 0.0
        %719 = vmatpush2.msra.mxu0 0.0
        %720 = vmatprep.subr.mxu0 0.0
        %721 = vmatpush2.msra.mxu0 0.0
        %722 = vmatprep.subr.mxu0 0.0
        %723 = vmatpush2.msra.mxu0 0.0
        %724 = vmatprep.subr.mxu0 0.0
        %725 = vmatpush2.msra.mxu0 0.0
        %726 = vmatprep.subr.mxu0 0.0
        %727 = vmatpush2.msra.mxu0 0.0
        %728 = vmatprep.subr.mxu0 0.0
        %729 = vmatpush2.msra.mxu0 0.0
        %730 = vmatprep.subr.mxu0 0.0
        %731 = vmatpush2.msra.mxu0 0.0
        %732 = vmatprep.subr.mxu0 0.0
        %733 = vmatpush2.msra.mxu0 0.0
        %734 = vmatprep.subr.mxu0 0.0
        %735 = vmatpush2.msra.mxu0 0.0
        %736 = vmatprep.subr.mxu0 0.0
        %737 = vmatpush2.msra.mxu0 0.0
        %738 = vmatprep.mubr.f32.mxu0 0.0
        %739 = vmatmul.mubr.f32.gmra.mxu0 %v672
        %v740 = vpop.f32.mrf.mxu0
        %v741 = vadd.f32 %v575, %v740
        %v742 = vpop.f32.mrf.mxu0
        %v743 = vadd.f32 %v575, %v742
        %744 = vdwg.mxu0
        %v745 = vmax.f32 %v741, 0.0
        %v746 = vmax.f32 %v743, 0.0
        %s747 = scalar_lea.vmem %s4, 8
        %v748 = vld [vmem:[%s747] sm:$0xff]
        %v749 = vmul.f32 %v746, %v311
        %v750 = vmul.f32 %v745, %v315
        %v751 = vmul.f32 %v746, %v313
        %v752 = vmul.f32 %v746, %v332
        %v753 = vmul.f32 %v745, %v336
        %v754 = vmul.f32 %v746, %v334
        %v755 = vmul.f32 %v746, %v353
        %v756 = vmul.f32 %v745, %v357
        %v757 = vmul.f32 %v746, %v355
        %v758 = vmul.f32 %v746, %v374
        %v759 = vmul.f32 %v745, %v378
        %v760 = vmul.f32 %v746, %v376
        %v761 = vmul.f32 %v745, %v389
        %v762 = vmul.f32 %v746, %v393
        %v763 = vmul.f32 %v745, %v408
        %v764 = vmul.f32 %v746, %v412
        %v765 = vmul.f32 %v745, %v410
        %v766 = vmul.f32 %v745, %v429
        %v767 = vmul.f32 %v746, %v433
        %v768 = vmul.f32 %v745, %v431
        %v769 = vmul.f32 %v745, %v450
        %v770 = vmul.f32 %v746, %v454
        %v771 = vmul.f32 %v745, %v452
        %v772 = vmul.f32 %v745, %v471
        %v773 = vmul.f32 %v746, %v475
        %v774 = vmul.f32 %v745, %v473
        %778 = vrot.lane.b32.xlu0 %v752, 127
        %v779 = vpop.permute.xlu0 %778
        %780 = vrot.lane.b32.xlu0 %v753, 127
        %v781 = vpop.permute.xlu0 %780
        %782 = vrot.lane.b32.xlu0 %v754, 127
        %v783 = vpop.permute.xlu0 %782
        %v784 = vsel %vm377, %v779, %v781
        %v785 = vsel %vm377, %v781, %v783
        %789 = vrot.lane.b32.xlu0 %v755, 126
        %v790 = vpop.permute.xlu0 %789
        %791 = vrot.lane.b32.xlu0 %v756, 126
        %v792 = vpop.permute.xlu0 %791
        %793 = vrot.lane.b32.xlu0 %v757, 126
        %v794 = vpop.permute.xlu0 %793
        %v795 = vsel %vm502, %v790, %v792
        %v796 = vsel %vm502, %v792, %v794
        %800 = vrot.lane.b32.xlu0 %v758, 112
        %v801 = vpop.permute.xlu0 %800
        %802 = vrot.lane.b32.xlu0 %v759, 112
        %v803 = vpop.permute.xlu0 %802
        %804 = vrot.lane.b32.xlu0 %v760, 112
        %v805 = vpop.permute.xlu0 %804
        %v806 = vsel %vm335, %v801, %v803
        %v807 = vsel %vm335, %v803, %v805
        %810 = vrot.lane.b32.xlu0 %v761, 111
        %v811 = vpop.permute.xlu0 %810
        %812 = vrot.lane.b32.xlu0 %v762, 111
        %v813 = vpop.permute.xlu0 %812
        %v814 = vsel %vm314, %v811, %v813
        %818 = vrot.lane.b32.xlu0 %v763, 110
        %v819 = vpop.permute.xlu0 %818
        %820 = vrot.lane.b32.xlu0 %v764, 110
        %v821 = vpop.permute.xlu0 %820
        %822 = vrot.lane.b32.xlu0 %v765, 110
        %v823 = vpop.permute.xlu0 %822
        %v824 = vsel %vm532, %v819, %v821
        %v825 = vsel %vm532, %v821, %v823
        %829 = vrot.lane.b32.xlu0 %v766, 96
        %v830 = vpop.permute.xlu0 %829
        %831 = vrot.lane.b32.xlu0 %v767, 96
        %v832 = vpop.permute.xlu0 %831
        %833 = vrot.lane.b32.xlu0 %v768, 96
        %v834 = vpop.permute.xlu0 %833
        %v835 = vsel %vm544, %v830, %v832
        %v836 = vsel %vm544, %v832, %v834
        %840 = vrot.lane.b32.xlu0 %v769, 95
        %v841 = vpop.permute.xlu0 %840
        %842 = vrot.lane.b32.xlu0 %v770, 95
        %v843 = vpop.permute.xlu0 %842
        %844 = vrot.lane.b32.xlu0 %v771, 95
        %v845 = vpop.permute.xlu0 %844
        %v846 = vsel %vm556, %v841, %v843
        %v847 = vsel %vm556, %v843, %v845
        %851 = vrot.lane.b32.xlu0 %v772, 94
        %v852 = vpop.permute.xlu0 %851
        %853 = vrot.lane.b32.xlu0 %v773, 94
        %v854 = vpop.permute.xlu0 %853
        %855 = vrot.lane.b32.xlu0 %v774, 94
        %v856 = vpop.permute.xlu0 %855
        %v857 = vsel %vm568, %v852, %v854
        %v858 = vsel %vm568, %v854, %v856
        %v859 = vld [vmem:[%s2] sm:$0xff]
        %861 = vset.pattern.permute.xlu0 0
        %862 = vperm.xlu0 %861, %v748
        %v863 = vpop.permute.xlu0 %862
        %868 = vrot.lane.b32.xlu0 %v749, 17
        %v869 = vpop.permute.xlu0 %868
        %870 = vrot.lane.b32.xlu0 %v750, 17
        %v871 = vpop.permute.xlu0 %870
        %872 = vrot.lane.b32.xlu0 %v751, 17
        %v873 = vpop.permute.xlu0 %872
        %874 = vrot.lane.b32.xlu0 %v784, 17
        %v875 = vpop.permute.xlu0 %874
        %876 = vrot.lane.b32.xlu0 %v785, 17
        %v877 = vpop.permute.xlu0 %876
        %878 = vrot.lane.b32.xlu0 %v783, 17
        %v879 = vpop.permute.xlu0 %878
        %880 = vrot.lane.b32.xlu0 %v795, 17
        %v881 = vpop.permute.xlu0 %880
        %882 = vrot.lane.b32.xlu0 %v796, 17
        %v883 = vpop.permute.xlu0 %882
        %884 = vrot.lane.b32.xlu0 %v794, 17
        %v885 = vpop.permute.xlu0 %884
        %886 = vrot.lane.b32.xlu0 %v806, 17
        %v887 = vpop.permute.xlu0 %886
        %888 = vrot.lane.b32.xlu0 %v807, 17
        %v889 = vpop.permute.xlu0 %888
        %890 = vrot.lane.b32.xlu0 %v805, 17
        %v891 = vpop.permute.xlu0 %890
        %892 = vrot.lane.b32.xlu0 %v811, 17
        %v893 = vpop.permute.xlu0 %892
        %894 = vrot.lane.b32.xlu0 %v814, 17
        %v895 = vpop.permute.xlu0 %894
        %896 = vrot.lane.b32.xlu0 %v813, 17
        %v897 = vpop.permute.xlu0 %896
        %898 = vrot.lane.b32.xlu0 %v819, 17
        %v899 = vpop.permute.xlu0 %898
        %900 = vrot.lane.b32.xlu0 %v824, 17
        %v901 = vpop.permute.xlu0 %900
        %902 = vrot.lane.b32.xlu0 %v825, 17
        %v903 = vpop.permute.xlu0 %902
        %904 = vrot.lane.b32.xlu0 %v830, 17
        %v905 = vpop.permute.xlu0 %904
        %906 = vrot.lane.b32.xlu0 %v835, 17
        %v907 = vpop.permute.xlu0 %906
        %908 = vrot.lane.b32.xlu0 %v836, 17
        %v909 = vpop.permute.xlu0 %908
        %910 = vrot.lane.b32.xlu0 %v841, 17
        %v911 = vpop.permute.xlu0 %910
        %912 = vrot.lane.b32.xlu0 %v846, 17
        %v913 = vpop.permute.xlu0 %912
        %914 = vrot.lane.b32.xlu0 %v847, 17
        %v915 = vpop.permute.xlu0 %914
        %916 = vrot.lane.b32.xlu0 %v852, 17
        %v917 = vpop.permute.xlu0 %916
        %918 = vrot.lane.b32.xlu0 %v857, 17
        %v919 = vpop.permute.xlu0 %918
        %920 = vrot.lane.b32.xlu0 %v858, 17
        %v921 = vpop.permute.xlu0 %920
        %v922 = vsel %vm474, %v869, %v871
        %v923 = vsel %vm474, %v871, %v873
        %v924 = vsel %vm474, %v875, %v877
        %v925 = vsel %vm474, %v877, %v879
        %v926 = vsel %vm474, %v881, %v883
        %v927 = vsel %vm474, %v883, %v885
        %v928 = vsel %vm474, %v887, %v889
        %v929 = vsel %vm474, %v889, %v891
        %v930 = vsel %vm474, %v893, %v895
        %v931 = vsel %vm474, %v895, %v897
        %v932 = vsel %vm474, %v899, %v901
        %v933 = vsel %vm474, %v901, %v903
        %v934 = vsel %vm474, %v905, %v907
        %v935 = vsel %vm474, %v907, %v909
        %v936 = vsel %vm474, %v911, %v913
        %v937 = vsel %vm474, %v913, %v915
        %v938 = vsel %vm474, %v917, %v919
        %v939 = vsel %vm474, %v919, %v921
        %v959 = vsel %vm670, %v859, 0
        %961 = vmatprep.subr.mxu0 0.0
        %962 = vmatpush1.msra.mxu0 0.0
        %963 = vmatprep.subr.mxu0 0.0
        %964 = vmatpush1.msra.mxu0 0.0
        %965 = vmatprep.subr.mxu0 0.0
        %966 = vmatpush1.msra.mxu0 0.0
        %967 = vmatprep.subr.mxu0 0.0
        %968 = vmatpush1.msra.mxu0 0.0
        %969 = vmatprep.subr.mxu0 0.0
        %970 = vmatpush1.msra.mxu0 0.0
        %971 = vmatprep.subr.mxu0 0.0
        %972 = vmatpush1.msra.mxu0 0.0
        %973 = vmatprep.subr.mxu0 0.0
        %974 = vmatpush1.msra.mxu0 0.0
        %975 = vmatprep.subr.mxu0 %v939
        %976 = vmatpush1.msra.mxu0 %v938
        %977 = vmatprep.subr.mxu0 %v937
        %978 = vmatpush1.msra.mxu0 %v936
        %979 = vmatprep.subr.mxu0 %v935
        %980 = vmatpush1.msra.mxu0 %v934
        %981 = vmatprep.subr.mxu0 %v933
        %982 = vmatpush1.msra.mxu0 %v932
        %983 = vmatprep.subr.mxu0 %v931
        %984 = vmatpush1.msra.mxu0 %v930
        %985 = vmatprep.subr.mxu0 %v929
        %986 = vmatpush1.msra.mxu0 %v928
        %987 = vmatprep.subr.mxu0 %v927
        %988 = vmatpush1.msra.mxu0 %v926
        %989 = vmatprep.subr.mxu0 %v925
        %990 = vmatpush1.msra.mxu0 %v924
        %991 = vmatprep.subr.mxu0 %v923
        %992 = vmatpush1.msra.mxu0 %v922
        %993 = vmatprep.subr.mxu0 0.0
        %994 = vmatpush2.msra.mxu0 0.0
        %995 = vmatprep.subr.mxu0 0.0
        %996 = vmatpush2.msra.mxu0 0.0
        %997 = vmatprep.subr.mxu0 0.0
        %998 = vmatpush2.msra.mxu0 0.0
        %999 = vmatprep.subr.mxu0 0.0
        %1000 = vmatpush2.msra.mxu0 0.0
        %1001 = vmatprep.subr.mxu0 0.0
        %1002 = vmatpush2.msra.mxu0 0.0
        %1003 = vmatprep.subr.mxu0 0.0
        %1004 = vmatpush2.msra.mxu0 0.0
        %1005 = vmatprep.subr.mxu0 0.0
        %1006 = vmatpush2.msra.mxu0 0.0
        %1007 = vmatprep.subr.mxu0 0.0
        %1008 = vmatpush2.msra.mxu0 0.0
        %1009 = vmatprep.subr.mxu0 0.0
        %1010 = vmatpush2.msra.mxu0 0.0
        %1011 = vmatprep.subr.mxu0 0.0
        %1012 = vmatpush2.msra.mxu0 0.0
        %1013 = vmatprep.subr.mxu0 0.0
        %1014 = vmatpush2.msra.mxu0 0.0
        %1015 = vmatprep.subr.mxu0 0.0
        %1016 = vmatpush2.msra.mxu0 0.0
        %1017 = vmatprep.subr.mxu0 0.0
        %1018 = vmatpush2.msra.mxu0 0.0
        %1019 = vmatprep.subr.mxu0 0.0
        %1020 = vmatpush2.msra.mxu0 0.0
        %1021 = vmatprep.subr.mxu0 0.0
        %1022 = vmatpush2.msra.mxu0 0.0
        %1023 = vmatprep.subr.mxu0 0.0
        %1024 = vmatpush2.msra.mxu0 0.0
        %1025 = vmatprep.mubr.f32.mxu0 0.0
        %1026 = vmatmul.mubr.f32.gmra.mxu0 %v959
        %v1027 = vpop.f32.mrf.mxu0
        %v1028 = vadd.f32 %v863, %v1027
        %v1029 = vpop.f32.mrf.mxu0
        %v1030 = vadd.f32 %v863, %v1029
        %1031 = vdwg.mxu0
        %v1032 = vmax.f32 %v1028, 0.0
        %v1033 = vmax.f32 %v1030, 0.0
        %s1034 = scalar_lea.vmem %s4, 16
        %v1035 = vld [vmem:[%s1034] sm:$0xff]
        %v1036 = vmul.f32 %v1033, %v311
        %v1037 = vmul.f32 %v1032, %v315
        %v1038 = vmul.f32 %v1033, %v313
        %v1039 = vmul.f32 %v1033, %v332
        %v1040 = vmul.f32 %v1032, %v336
        %v1041 = vmul.f32 %v1033, %v334
        %v1042 = vmul.f32 %v1033, %v353
        %v1043 = vmul.f32 %v1032, %v357
        %v1044 = vmul.f32 %v1033, %v355
        %v1045 = vmul.f32 %v1033, %v374
        %v1046 = vmul.f32 %v1032, %v378
        %v1047 = vmul.f32 %v1033, %v376
        %v1048 = vmul.f32 %v1032, %v389
        %v1049 = vmul.f32 %v1033, %v393
        %v1050 = vmul.f32 %v1032, %v408
        %v1051 = vmul.f32 %v1033, %v412
        %v1052 = vmul.f32 %v1032, %v410
        %v1053 = vmul.f32 %v1032, %v429
        %v1054 = vmul.f32 %v1033, %v433
        %v1055 = vmul.f32 %v1032, %v431
        %v1056 = vmul.f32 %v1032, %v450
        %v1057 = vmul.f32 %v1033, %v454
        %v1058 = vmul.f32 %v1032, %v452
        %v1059 = vmul.f32 %v1032, %v471
        %v1060 = vmul.f32 %v1033, %v475
        %v1061 = vmul.f32 %v1032, %v473
        %1065 = vrot.lane.b32.xlu0 %v1039, 127
        %v1066 = vpop.permute.xlu0 %1065
        %1067 = vrot.lane.b32.xlu0 %v1040, 127
        %v1068 = vpop.permute.xlu0 %1067
        %1069 = vrot.lane.b32.xlu0 %v1041, 127
        %v1070 = vpop.permute.xlu0 %1069
        %v1071 = vsel %vm377, %v1066, %v1068
        %v1072 = vsel %vm377, %v1068, %v1070
        %1076 = vrot.lane.b32.xlu0 %v1042, 126
        %v1077 = vpop.permute.xlu0 %1076
        %1078 = vrot.lane.b32.xlu0 %v1043, 126
        %v1079 = vpop.permute.xlu0 %1078
        %1080 = vrot.lane.b32.xlu0 %v1044, 126
        %v1081 = vpop.permute.xlu0 %1080
        %v1082 = vsel %vm502, %v1077, %v1079
        %v1083 = vsel %vm502, %v1079, %v1081
        %1087 = vrot.lane.b32.xlu0 %v1045, 112
        %v1088 = vpop.permute.xlu0 %1087
        %1089 = vrot.lane.b32.xlu0 %v1046, 112
        %v1090 = vpop.permute.xlu0 %1089
        %1091 = vrot.lane.b32.xlu0 %v1047, 112
        %v1092 = vpop.permute.xlu0 %1091
        %v1093 = vsel %vm335, %v1088, %v1090
        %v1094 = vsel %vm335, %v1090, %v1092
        %1097 = vrot.lane.b32.xlu0 %v1048, 111
        %v1098 = vpop.permute.xlu0 %1097
        %1099 = vrot.lane.b32.xlu0 %v1049, 111
        %v1100 = vpop.permute.xlu0 %1099
        %v1101 = vsel %vm314, %v1098, %v1100
        %1105 = vrot.lane.b32.xlu0 %v1050, 110
        %v1106 = vpop.permute.xlu0 %1105
        %1107 = vrot.lane.b32.xlu0 %v1051, 110
        %v1108 = vpop.permute.xlu0 %1107
        %1109 = vrot.lane.b32.xlu0 %v1052, 110
        %v1110 = vpop.permute.xlu0 %1109
        %v1111 = vsel %vm532, %v1106, %v1108
        %v1112 = vsel %vm532, %v1108, %v1110
        %1116 = vrot.lane.b32.xlu0 %v1053, 96
        %v1117 = vpop.permute.xlu0 %1116
        %1118 = vrot.lane.b32.xlu0 %v1054, 96
        %v1119 = vpop.permute.xlu0 %1118
        %1120 = vrot.lane.b32.xlu0 %v1055, 96
        %v1121 = vpop.permute.xlu0 %1120
        %v1122 = vsel %vm544, %v1117, %v1119
        %v1123 = vsel %vm544, %v1119, %v1121
        %1127 = vrot.lane.b32.xlu0 %v1056, 95
        %v1128 = vpop.permute.xlu0 %1127
        %1129 = vrot.lane.b32.xlu0 %v1057, 95
        %v1130 = vpop.permute.xlu0 %1129
        %1131 = vrot.lane.b32.xlu0 %v1058, 95
        %v1132 = vpop.permute.xlu0 %1131
        %v1133 = vsel %vm556, %v1128, %v1130
        %v1134 = vsel %vm556, %v1130, %v1132
        %1138 = vrot.lane.b32.xlu0 %v1059, 94
        %v1139 = vpop.permute.xlu0 %1138
        %1140 = vrot.lane.b32.xlu0 %v1060, 94
        %v1141 = vpop.permute.xlu0 %1140
        %1142 = vrot.lane.b32.xlu0 %v1061, 94
        %v1143 = vpop.permute.xlu0 %1142
        %v1144 = vsel %vm568, %v1139, %v1141
        %v1145 = vsel %vm568, %v1141, %v1143
        %v1146 = vld [vmem:[#allocation5] sm:$0xff]
        %1148 = vset.pattern.permute.xlu0 0
        %1149 = vperm.xlu0 %1148, %v1035
        %v1150 = vpop.permute.xlu0 %1149
        %1155 = vrot.lane.b32.xlu0 %v1036, 17
        %v1156 = vpop.permute.xlu0 %1155
        %1157 = vrot.lane.b32.xlu0 %v1037, 17
        %v1158 = vpop.permute.xlu0 %1157
        %1159 = vrot.lane.b32.xlu0 %v1038, 17
        %v1160 = vpop.permute.xlu0 %1159
        %1161 = vrot.lane.b32.xlu0 %v1071, 17
        %v1162 = vpop.permute.xlu0 %1161
        %1163 = vrot.lane.b32.xlu0 %v1072, 17
        %v1164 = vpop.permute.xlu0 %1163
        %1165 = vrot.lane.b32.xlu0 %v1070, 17
        %v1166 = vpop.permute.xlu0 %1165
        %1167 = vrot.lane.b32.xlu0 %v1082, 17
        %v1168 = vpop.permute.xlu0 %1167
        %1169 = vrot.lane.b32.xlu0 %v1083, 17
        %v1170 = vpop.permute.xlu0 %1169
        %1171 = vrot.lane.b32.xlu0 %v1081, 17
        %v1172 = vpop.permute.xlu0 %1171
        %1173 = vrot.lane.b32.xlu0 %v1093, 17
        %v1174 = vpop.permute.xlu0 %1173
        %1175 = vrot.lane.b32.xlu0 %v1094, 17
        %v1176 = vpop.permute.xlu0 %1175
        %1177 = vrot.lane.b32.xlu0 %v1092, 17
        %v1178 = vpop.permute.xlu0 %1177
        %1179 = vrot.lane.b32.xlu0 %v1098, 17
        %v1180 = vpop.permute.xlu0 %1179
        %1181 = vrot.lane.b32.xlu0 %v1101, 17
        %v1182 = vpop.permute.xlu0 %1181
        %1183 = vrot.lane.b32.xlu0 %v1100, 17
        %v1184 = vpop.permute.xlu0 %1183
        %1185 = vrot.lane.b32.xlu0 %v1106, 17
        %v1186 = vpop.permute.xlu0 %1185
        %1187 = vrot.lane.b32.xlu0 %v1111, 17
        %v1188 = vpop.permute.xlu0 %1187
        %1189 = vrot.lane.b32.xlu0 %v1112, 17
        %v1190 = vpop.permute.xlu0 %1189
        %1191 = vrot.lane.b32.xlu0 %v1117, 17
        %v1192 = vpop.permute.xlu0 %1191
        %1193 = vrot.lane.b32.xlu0 %v1122, 17
        %v1194 = vpop.permute.xlu0 %1193
        %1195 = vrot.lane.b32.xlu0 %v1123, 17
        %v1196 = vpop.permute.xlu0 %1195
        %1197 = vrot.lane.b32.xlu0 %v1128, 17
        %v1198 = vpop.permute.xlu0 %1197
        %1199 = vrot.lane.b32.xlu0 %v1133, 17
        %v1200 = vpop.permute.xlu0 %1199
        %1201 = vrot.lane.b32.xlu0 %v1134, 17
        %v1202 = vpop.permute.xlu0 %1201
        %1203 = vrot.lane.b32.xlu0 %v1139, 17
        %v1204 = vpop.permute.xlu0 %1203
        %1205 = vrot.lane.b32.xlu0 %v1144, 17
        %v1206 = vpop.permute.xlu0 %1205
        %1207 = vrot.lane.b32.xlu0 %v1145, 17
        %v1208 = vpop.permute.xlu0 %1207
        %v1209 = vsel %vm474, %v1156, %v1158
        %v1210 = vsel %vm474, %v1158, %v1160
        %v1211 = vsel %vm474, %v1162, %v1164
        %v1212 = vsel %vm474, %v1164, %v1166
        %v1213 = vsel %vm474, %v1168, %v1170
        %v1214 = vsel %vm474, %v1170, %v1172
        %v1215 = vsel %vm474, %v1174, %v1176
        %v1216 = vsel %vm474, %v1176, %v1178
        %v1217 = vsel %vm474, %v1180, %v1182
        %v1218 = vsel %vm474, %v1182, %v1184
        %v1219 = vsel %vm474, %v1186, %v1188
        %v1220 = vsel %vm474, %v1188, %v1190
        %v1221 = vsel %vm474, %v1192, %v1194
        %v1222 = vsel %vm474, %v1194, %v1196
        %v1223 = vsel %vm474, %v1198, %v1200
        %v1224 = vsel %vm474, %v1200, %v1202
        %v1225 = vsel %vm474, %v1204, %v1206
        %v1226 = vsel %vm474, %v1206, %v1208
        %v1246 = vsel %vm670, %v1146, 0
        %1248 = vmatprep.subr.mxu0 0.0
        %1249 = vmatpush1.msra.mxu0 0.0
        %1250 = vmatprep.subr.mxu0 0.0
        %1251 = vmatpush1.msra.mxu0 0.0
        %1252 = vmatprep.subr.mxu0 0.0
        %1253 = vmatpush1.msra.mxu0 0.0
        %1254 = vmatprep.subr.mxu0 0.0
        %1255 = vmatpush1.msra.mxu0 0.0
        %1256 = vmatprep.subr.mxu0 0.0
        %1257 = vmatpush1.msra.mxu0 0.0
        %1258 = vmatprep.subr.mxu0 0.0
        %1259 = vmatpush1.msra.mxu0 0.0
        %1260 = vmatprep.subr.mxu0 0.0
        %1261 = vmatpush1.msra.mxu0 0.0
        %1262 = vmatprep.subr.mxu0 %v1226
        %1263 = vmatpush1.msra.mxu0 %v1225
        %1264 = vmatprep.subr.mxu0 %v1224
        %1265 = vmatpush1.msra.mxu0 %v1223
        %1266 = vmatprep.subr.mxu0 %v1222
        %1267 = vmatpush1.msra.mxu0 %v1221
        %1268 = vmatprep.subr.mxu0 %v1220
        %1269 = vmatpush1.msra.mxu0 %v1219
        %1270 = vmatprep.subr.mxu0 %v1218
        %1271 = vmatpush1.msra.mxu0 %v1217
        %1272 = vmatprep.subr.mxu0 %v1216
        %1273 = vmatpush1.msra.mxu0 %v1215
        %1274 = vmatprep.subr.mxu0 %v1214
        %1275 = vmatpush1.msra.mxu0 %v1213
        %1276 = vmatprep.subr.mxu0 %v1212
        %1277 = vmatpush1.msra.mxu0 %v1211
        %1278 = vmatprep.subr.mxu0 %v1210
        %1279 = vmatpush1.msra.mxu0 %v1209
        %1280 = vmatprep.subr.mxu0 0.0
        %1281 = vmatpush2.msra.mxu0 0.0
        %1282 = vmatprep.subr.mxu0 0.0
        %1283 = vmatpush2.msra.mxu0 0.0
        %1284 = vmatprep.subr.mxu0 0.0
        %1285 = vmatpush2.msra.mxu0 0.0
        %1286 = vmatprep.subr.mxu0 0.0
        %1287 = vmatpush2.msra.mxu0 0.0
        %1288 = vmatprep.subr.mxu0 0.0
        %1289 = vmatpush2.msra.mxu0 0.0
        %1290 = vmatprep.subr.mxu0 0.0
        %1291 = vmatpush2.msra.mxu0 0.0
        %1292 = vmatprep.subr.mxu0 0.0
        %1293 = vmatpush2.msra.mxu0 0.0
        %1294 = vmatprep.subr.mxu0 0.0
        %1295 = vmatpush2.msra.mxu0 0.0
        %1296 = vmatprep.subr.mxu0 0.0
        %1297 = vmatpush2.msra.mxu0 0.0
        %1298 = vmatprep.subr.mxu0 0.0
        %1299 = vmatpush2.msra.mxu0 0.0
        %1300 = vmatprep.subr.mxu0 0.0
        %1301 = vmatpush2.msra.mxu0 0.0
        %1302 = vmatprep.subr.mxu0 0.0
        %1303 = vmatpush2.msra.mxu0 0.0
        %1304 = vmatprep.subr.mxu0 0.0
        %1305 = vmatpush2.msra.mxu0 0.0
        %1306 = vmatprep.subr.mxu0 0.0
        %1307 = vmatpush2.msra.mxu0 0.0
        %1308 = vmatprep.subr.mxu0 0.0
        %1309 = vmatpush2.msra.mxu0 0.0
        %1310 = vmatprep.subr.mxu0 0.0
        %1311 = vmatpush2.msra.mxu0 0.0
        %1312 = vmatprep.mubr.f32.mxu0 0.0
        %1313 = vmatmul.mubr.f32.gmra.mxu0 %v1246
        %v1314 = vpop.f32.mrf.mxu0
        %v1315 = vadd.f32 %v1150, %v1314
        %v1316 = vpop.f32.mrf.mxu0
        %v1317 = vadd.f32 %v1150, %v1316
        %1318 = vdwg.mxu0
        %v1319 = vadd.f32 %v1315, %v745
        %v1320 = vadd.f32 %v1317, %v746
        %v1321 = vmax.f32 %v1319, 0.0
        %v1322 = vmax.f32 %v1320, 0.0
        %1323 = vst [vmem:[%s280] sm:$0xff] %v1321
        %1324 = vst [vmem:[%s280 + $0x8] sm:$0xff] %v1322
        %s1325 = sand.u32 %s163, 1
        %s1326 = scalar_lea.sflag [#allocation4], %s1325
        %s1327 = sand.u32 %s163, 1
        %s1328 = smul.addr %s1327, 16
        %s1329 = scalar_lea.vmem [#allocation7], %s1328
        // Predicated region
        $region53: #{tpu_custom_call.1} parent=43 // pred_check
          %p1330 = pneg %p173
        $region54: #{tpu_custom_call.1} parent=43 // pred_check_branch
          %1332 = sbr.rel (%p1330) target = $region56
        $region55: #{tpu_custom_call.1} parent=43 // pred_region
          %s1334 = ssub.s32 256, 256
          %1335 = vsyncadd %s1326, %s1334
          %s1336 = smul.addr %s24, 2
          %s1337 = smul.addr %s1336, 128
          %s1338 = scalar_lea.hbm %s6, %s1337
          %s1340 = sshll.u32 %s1329, 4
          %s1341 = int_to_ptr.vmem [resolvable:$true] %s1340
          %1343 = dma.vmem_to_hbm [thread:$0]  %s1341, 256, %s1338, %s1326
        $region56: #{tpu_custom_call.1} parent=43 // pred_fallthru
          _
      $region44: #{tpu_custom_call.1} parent=5 // pred_fallthru
        _
      %p1344 = scmp.le.s32.totalorder 2, %s19
      // Predicated region
      $region57: #{tpu_custom_call.1} parent=5 // pred_check
        %p1345 = pneg %p1344
      $region58: #{tpu_custom_call.1} parent=5 // pred_check_branch
        %1347 = sbr.rel (%p1345) target = $region60
      $region59: #{tpu_custom_call.1} parent=5 // pred_region
        %s1348 = ssub.s32 %s19, 2
        // Predicated region
        $region61: #{tpu_custom_call.1} parent=59 // pred_check
          %p1349 = pneg %p179
        $region62: #{tpu_custom_call.1} parent=59 // pred_check_branch
          %1351 = sbr.rel (%p1349) target = $region64
        $region63: #{tpu_custom_call.1} parent=59 // pred_region
          %s1352 = sand.u32 %s164, 1
          %s1353 = scalar_lea.sflag [#allocation4], %s1352
          %s1354 = sand.u32 %s164, 1
          %s1355 = smul.addr %s1354, 16
          %s1356 = scalar_lea.vmem [#allocation7], %s1355
          %1357 = dma.done %s1353, 256
        $region64: #{tpu_custom_call.1} parent=59 // pred_fallthru
          _
      $region60: #{tpu_custom_call.1} parent=5 // pred_fallthru
        _
    $region6: #{tpu_custom_call.1} parent=1 // loop_footer
      %s23 = sadd.s32 1, %s19
    $region7: #{tpu_custom_call.1} parent=1 // loop_footer_branch
      %18 = sbr.rel target = $region3
    $region8: #{tpu_custom_call.1} parent=1 // loop_exit
      _
    %1358 = vsyncpa [#allocation3], 1
    %s1359 = scalar_lea.sflag [#allocation3], 1
    %1360 = vsyncpa %s1359, 1
    %1361 = vsyncpa [#allocation6], 1
    %1362 = vsyncpa [#allocation4], 1
    %s1363 = scalar_lea.sflag [#allocation4], 1
    %1364 = vsyncpa %s1363, 1

</llo_original>
